<compile_context>
chip_gen: v6e
topology: v6e:2x2x1
jax: 0.10.0
libtpu: 0.0.40
codegen_flags: <defaults>
</compile_context>

<pallas_src>
import jax
import jax.numpy as jnp
from jax import lax
from jax.experimental import pallas as pl
from jax.experimental.pallas import tpu as pltpu


LAYER_SIZES = (10, 32, 16, 8, 2)   # input, h1, h2, h3, output
LANE = 128                          # packed-parameter buffer width
_PRECISION = lax.Precision.HIGHEST  # exact-f32 matmul passes (kernel is mem-bound)


def _round_up(x, m):
    return -(-x // m) * m


def _layer_offsets(sizes=LAYER_SIZES):
    """Static, sublane-aligned row offsets inside the packed (rows, 128) buffer.

    Per layer i: W_i (fan_in, fan_out) starts at an 8-aligned row `w_row`
    (cols [:fan_out]); the bias row b_i sits at the next 8-aligned row `b_row`.
    Everything else is zero.
    """
    offs = []
    r = 0
    for i in range(len(sizes) - 1):
        fin, fout = sizes[i], sizes[i + 1]
        w_row = r
        b_row = _round_up(w_row + fin, 8)
        offs.append((w_row, b_row, fin, fout))
        r = _round_up(b_row + 1, 8)
    return tuple(offs), _round_up(r, 8)


# ((0,16,10,32), (24,56,32,16), (64,80,16,8), (88,96,8,2)), 104 rows
_OFFSETS, _PACKED_ROWS = _layer_offsets()
_N_LAYERS = len(_OFFSETS)


def pack_params(params):
    """Pack w1..w4 / b1..b4 into a single (104, 128) f32 buffer (one DMA)."""
    buf = jnp.zeros((_PACKED_ROWS, LANE), jnp.float32)
    for li, (w_row, b_row, fin, fout) in enumerate(_OFFSETS):
        w = params[f"w{li + 1}"].astype(jnp.float32)              # (fin, fout)
        b = params[f"b{li + 1}"].reshape(1, fout).astype(jnp.float32)
        buf = buf.at[w_row:w_row + fin, :fout].set(w)
        buf = buf.at[b_row:b_row + 1, :fout].set(b)
    return buf


def _mlp_kernel(x_ref, wb_ref, o_ref):
    """Fused forward: (Linear -> ReLU) x3 -> Linear, all operands in VMEM.

    x_ref:  (tile_b, 10)
    wb_ref: (104, 128) packed, sublane-aligned weights + biases
    o_ref:  (tile_b, 2) -- only the useful lanes go back to HBM
    """
    h = x_ref[...]
    for li, (w_row, b_row, fin, fout) in enumerate(_OFFSETS):
        w = wb_ref[w_row:w_row + fin, :fout]        # (fin, fout) static view
        b = wb_ref[b_row:b_row + 1, :fout]          # (1, fout)   static view
        h = jnp.dot(h, w, preferred_element_type=jnp.float32,
                    precision=_PRECISION) + b
        if li < _N_LAYERS - 1:
            h = jnp.maximum(h, 0.0)                 # ReLU; Dropout = identity (eval)
    o_ref[...] = h.astype(o_ref.dtype)


def _batch_dim_semantics():
    """CORE_PARALLEL on the batch axis for v7x (2 TCs); plain parallel elsewhere."""
    try:
        kind = jax.devices()[0].device_kind.lower()
    except Exception:  # pragma: no cover - defensive
        kind = ""
    if "v7" in kind:
        return (pltpu.CORE_PARALLEL,)
    return ("parallel",)


def simple_demo_model_forward(x, packed_wb, *, tile_b=2048):
    """Run the fused MLP Pallas kernel.

    x:         (batch, 10) float32
    packed_wb: (104, 128) float32 from pack_params()
    returns    (batch, 2) float32
    """
    batch = x.shape[0]
    in_size = LAYER_SIZES[0]
    out_size = LAYER_SIZES[-1]

    if batch <= tile_b:
        # Small batch: single invocation, no grid / pipeline overhead,
        # full arrays mapped straight into VMEM.
        return pl.pallas_call(
            _mlp_kernel,
            out_shape=jax.ShapeDtypeStruct((batch, out_size), jnp.float32),
        )(x, packed_wb)

    # Large batch: tile the batch axis with an adaptive tile size so ragged
    # batches pad by <8 rows per tile instead of up to a full tile.
    num_tiles = -(-batch // tile_b)
    eff_tile = _round_up(-(-batch // num_tiles), 8)   # <= tile_b, multiple of 8
    padded_batch = num_tiles * eff_tile
    if padded_batch != batch:
        x = jnp.pad(x, ((0, padded_batch - batch), (0, 0)))

    out = pl.pallas_call(
        _mlp_kernel,
        out_shape=jax.ShapeDtypeStruct((padded_batch, out_size), jnp.float32),
        grid=(num_tiles,),
        in_specs=[
            pl.BlockSpec((eff_tile, in_size), lambda i: (i, 0)),
            pl.BlockSpec(packed_wb.shape, lambda i: (0, 0)),   # pinned in VMEM
        ],
        out_specs=pl.BlockSpec((eff_tile, out_size), lambda i: (i, 0)),
        compiler_params=pltpu.CompilerParams(
            dimension_semantics=_batch_dim_semantics(),
            vmem_limit_bytes=32 << 20,   # v5e scoped default is only 16 MiB
        ),
    )(x, packed_wb)
    return out[:batch]


def init_params(key, input_size=10, hidden_sizes=(32, 16, 8), output_size=2):
    """Deterministic init mimicking PyTorch nn.Linear default U[-1/sqrt(fan_in), +1/sqrt(fan_in)]."""
    sizes = [input_size] + list(hidden_sizes) + [output_size]
    params = {}
    keys = jax.random.split(key, 2 * (len(sizes) - 1))
    for i in range(len(sizes) - 1):
        fan_in, fan_out = sizes[i], sizes[i + 1]
        bound = 1.0 / (fan_in ** 0.5)
        params[f"w{i + 1}"] = jax.random.uniform(
            keys[2 * i], (fan_in, fan_out), minval=-bound, maxval=bound,
            dtype=jnp.float32)
        params[f"b{i + 1}"] = jax.random.uniform(
            keys[2 * i + 1], (fan_out,), minval=-bound, maxval=bound,
            dtype=jnp.float32)
    return params


def reference_forward(x, params):
    """Pure-JAX reference for correctness checking (same precision as kernel)."""
    h = x
    n = len(LAYER_SIZES) - 1
    for i in range(1, n):
        h = jnp.dot(h, params[f"w{i}"], precision=_PRECISION) + params[f"b{i}"]
        h = jnp.maximum(h, 0.0)
    return jnp.dot(h, params[f"w{n}"], precision=_PRECISION) + params[f"b{n}"]


if __name__ == "__main__":
    key = jax.random.PRNGKey(0)
    k_params, k_x_small, k_x_big = jax.random.split(key, 3)

    params = init_params(k_params)
    packed_wb = pack_params(params)

    # --- small-batch fused path (no grid) ---
    x_small = jax.random.normal(k_x_small, (8, LAYER_SIZES[0]), dtype=jnp.float32)
    out_small = jax.block_until_ready(simple_demo_model_forward(x_small, packed_wb))
    ref_small = reference_forward(x_small, params)
    assert out_small.shape == (8, LAYER_SIZES[-1]), out_small.shape
    assert jnp.allclose(out_small, ref_small, atol=1e-5, rtol=1e-5), \
        "small-batch mismatch vs reference"

    # --- batch-tiled path (ragged batch, grid over batch, weights VMEM-resident) ---
    x_big = jax.random.normal(k_x_big, (300, LAYER_SIZES[0]), dtype=jnp.float32)
    out_big = jax.block_until_ready(
        simple_demo_model_forward(x_big, packed_wb, tile_b=128))
    ref_big = reference_forward(x_big, params)
    assert out_big.shape == (300, LAYER_SIZES[-1]), out_big.shape
    assert jnp.allclose(out_big, ref_big, atol=1e-5, rtol=1e-5), \
        "tiled-batch mismatch vs reference"

    print("KERNEL_OK")
</pallas_src>

<mosaic_0001>
module attributes {stable_mosaic.version = 11 : i64} {
  func.func @_mlp_kernel(%arg0: memref<8x10xf32, #tpu.memory_space<vmem>>, %arg1: memref<104x128xf32, #tpu.memory_space<vmem>>, %arg2: memref<8x2xf32, #tpu.memory_space<vmem>>) attributes {dimension_semantics = [], scalar_prefetch = 0 : i64, scratch_operands = 0 : i64, tpu.core_type = #tpu.core_type<tc>} {
    %c0 = arith.constant 0 : index
    %c0_0 = arith.constant 0 : index
    %0 = vector.load %arg0[%c0, %c0_0] : memref<8x10xf32, #tpu.memory_space<vmem>>, vector<8x10xf32>
    %c0_1 = arith.constant 0 : index
    %c0_2 = arith.constant 0 : index
    %1 = vector.load %arg1[%c0_1, %c0_2] : memref<104x128xf32, #tpu.memory_space<vmem>>, vector<10x32xf32>
    %c16 = arith.constant 16 : index
    %c0_3 = arith.constant 0 : index
    %2 = vector.load %arg1[%c16, %c0_3] : memref<104x128xf32, #tpu.memory_space<vmem>>, vector<1x32xf32>
    %cst = arith.constant dense<0.000000e+00> : vector<8x32xf32>
    %3 = tpu.matmul %0, %1, %cst {dimension_numbers = #tpu.dot_dimension_numbers<[1], [0], [0], [1], [0, 0, 1, 1], [], []>, precision = #tpu.contract_precision<fp32>} : vector<8x10xf32>, vector<10x32xf32>, vector<8x32xf32> -> vector<8x32xf32>
    %4 = vector.broadcast %2 : vector<1x32xf32> to vector<8x32xf32>
    %5 = arith.addf %3, %4 : vector<8x32xf32>
    %cst_4 = arith.constant 0.000000e+00 : f32
    %6 = vector.broadcast %cst_4 : f32 to vector<8x32xf32>
    %7 = arith.maximumf %5, %6 : vector<8x32xf32>
    %c24 = arith.constant 24 : index
    %c0_5 = arith.constant 0 : index
    %8 = vector.load %arg1[%c24, %c0_5] : memref<104x128xf32, #tpu.memory_space<vmem>>, vector<32x16xf32>
    %c56 = arith.constant 56 : index
    %c0_6 = arith.constant 0 : index
    %9 = vector.load %arg1[%c56, %c0_6] : memref<104x128xf32, #tpu.memory_space<vmem>>, vector<1x16xf32>
    %cst_7 = arith.constant dense<0.000000e+00> : vector<8x16xf32>
    %10 = tpu.matmul %7, %8, %cst_7 {dimension_numbers = #tpu.dot_dimension_numbers<[1], [0], [0], [1], [0, 0, 1, 1], [], []>, precision = #tpu.contract_precision<fp32>} : vector<8x32xf32>, vector<32x16xf32>, vector<8x16xf32> -> vector<8x16xf32>
    %11 = vector.broadcast %9 : vector<1x16xf32> to vector<8x16xf32>
    %12 = arith.addf %10, %11 : vector<8x16xf32>
    %cst_8 = arith.constant 0.000000e+00 : f32
    %13 = vector.broadcast %cst_8 : f32 to vector<8x16xf32>
    %14 = arith.maximumf %12, %13 : vector<8x16xf32>
    %c64 = arith.constant 64 : index
    %c0_9 = arith.constant 0 : index
    %15 = vector.load %arg1[%c64, %c0_9] : memref<104x128xf32, #tpu.memory_space<vmem>>, vector<16x8xf32>
    %c80 = arith.constant 80 : index
    %c0_10 = arith.constant 0 : index
    %16 = vector.load %arg1[%c80, %c0_10] : memref<104x128xf32, #tpu.memory_space<vmem>>, vector<1x8xf32>
    %cst_11 = arith.constant dense<0.000000e+00> : vector<8x8xf32>
    %17 = tpu.matmul %14, %15, %cst_11 {dimension_numbers = #tpu.dot_dimension_numbers<[1], [0], [0], [1], [0, 0, 1, 1], [], []>, precision = #tpu.contract_precision<fp32>} : vector<8x16xf32>, vector<16x8xf32>, vector<8x8xf32> -> vector<8x8xf32>
    %18 = vector.broadcast %16 : vector<1x8xf32> to vector<8x8xf32>
    %19 = arith.addf %17, %18 : vector<8x8xf32>
    %cst_12 = arith.constant 0.000000e+00 : f32
    %20 = vector.broadcast %cst_12 : f32 to vector<8x8xf32>
    %21 = arith.maximumf %19, %20 : vector<8x8xf32>
    %c88 = arith.constant 88 : index
    %c0_13 = arith.constant 0 : index
    %22 = vector.load %arg1[%c88, %c0_13] : memref<104x128xf32, #tpu.memory_space<vmem>>, vector<8x2xf32>
    %c96 = arith.constant 96 : index
    %c0_14 = arith.constant 0 : index
    %23 = vector.load %arg1[%c96, %c0_14] : memref<104x128xf32, #tpu.memory_space<vmem>>, vector<1x2xf32>
    %cst_15 = arith.constant dense<0.000000e+00> : vector<8x2xf32>
    %24 = tpu.matmul %21, %22, %cst_15 {dimension_numbers = #tpu.dot_dimension_numbers<[1], [0], [0], [1], [0, 0, 1, 1], [], []>, precision = #tpu.contract_precision<fp32>} : vector<8x8xf32>, vector<8x2xf32>, vector<8x2xf32> -> vector<8x2xf32>
    %25 = vector.broadcast %23 : vector<1x2xf32> to vector<8x2xf32>
    %26 = arith.addf %24, %25 : vector<8x2xf32>
    %c0_16 = arith.constant 0 : index
    %c0_17 = arith.constant 0 : index
    %27 = vector.load %arg2[%c0_16, %c0_17] : memref<8x2xf32, #tpu.memory_space<vmem>>, vector<8x2xf32>
    tpu.vector_store %arg2[%c0_16, %c0_17], %26 {strides = array<i32>} : memref<8x2xf32, #tpu.memory_space<vmem>>, vector<8x2xf32>,
    return
  }
}

</mosaic_0001>

<llo_original>
// kernel: tpu_custom_call.1
$region0: #{tpu_custom_call.1}
  #allocation0 [shape = 'u32[]', space=smem, size = 0x4, offset = 0x4, fixed_abs, tag = 'smem constant byte address 0x4 - core index']
  #allocation1 [shape = 'u32[144,128]{1,0:T(1,128)}', space=vmem, size = 0x12000, scoped, tag = 'internal scratch']
  %s0 = inlined_call_operand.hbm [shape: f32[8,10], index: 0, kind: input, shape index: {}]
  %s1 = inlined_call_operand.hbm [shape: f32[104,128], index: 1, kind: input, shape index: {}]
  %s2 = inlined_call_operand.vmem [shape: f32[8,2], index: 2, kind: output, shape index: {}]
  %s3 = sld [smem:[#allocation0]]
  $region26: #{tpu_custom_call.1} parent=0
    _
  %s5 = ssub.s32 1, %s3
  %s6 = scalar_select 0, %s5, %s3
  $region1: #{tpu_custom_call.1} parent=0
    #allocation2 [shape = 'u8[4096]{0}', space=vmem, size = 0x1000, scoped, tag = 'input window, operand 0, single buffered']
    #allocation3 [shape = 's32[1]{0}', space=sflag, size = 0x4, scoped, tag = 'scoped memory for tpu_custom_call.1']
    #allocation4 [shape = 'u8[53248]{0}', space=vmem, size = 0xd000, scoped, tag = 'input window, operand 1, single buffered']
    #allocation5 [shape = 's32[1]{0}', space=sflag, size = 0x4, scoped, tag = 'scoped memory for tpu_custom_call.1']
    %7 = vsyncpa [#allocation3], 0
    %8 = vsyncpa [#allocation5], 0
    // Predicated region
    $region2: #{tpu_custom_call.1} parent=1 // pred_check
      _
    $region3: #{tpu_custom_call.1} parent=1 // pred_check_branch
      %10 = sbr.rel (0) target = $region5
    $region4: #{tpu_custom_call.1} parent=1 // pred_region
      %s12 = ssub.s32 128, 128
      %13 = vsyncadd [#allocation3], %s12
      %s15 = sshll.u32 [#allocation2], 4
      %s16 = int_to_ptr.vmem [resolvable:$true] %s15
      %18 = dma.hbm_to_vmem [thread:$0]  %s0, 128, %s16, [#allocation3]
    $region5: #{tpu_custom_call.1} parent=1 // pred_fallthru
      _
    // Predicated region
    $region6: #{tpu_custom_call.1} parent=1 // pred_check
      _
    $region7: #{tpu_custom_call.1} parent=1 // pred_check_branch
      %20 = sbr.rel (0) target = $region9
    $region8: #{tpu_custom_call.1} parent=1 // pred_region
      %s22 = ssub.s32 1664, 1664
      %23 = vsyncadd [#allocation5], %s22
      %s24 = sshll.u32 [#allocation4], 4
      %s25 = int_to_ptr.vmem [resolvable:$true] %s24
      %30 = dma.hbm_to_vmem [thread:$0]  %s1, 1664, %s25, [#allocation5], 128, 128, 8
    $region9: #{tpu_custom_call.1} parent=1 // pred_fallthru
      _
    // Predicated region
    $region10: #{tpu_custom_call.1} parent=1 // pred_check
      _
    $region11: #{tpu_custom_call.1} parent=1 // pred_check_branch
      %32 = sbr.rel (0) target = $region13
    $region12: #{tpu_custom_call.1} parent=1 // pred_region
      %33 = dma.done [#allocation3], 128
    $region13: #{tpu_custom_call.1} parent=1 // pred_fallthru
      _
    // Predicated region
    $region14: #{tpu_custom_call.1} parent=1 // pred_check
      _
    $region15: #{tpu_custom_call.1} parent=1 // pred_check_branch
      %35 = sbr.rel (0) target = $region17
    $region16: #{tpu_custom_call.1} parent=1 // pred_region
      %36 = dma.done [#allocation5], 1664
    $region17: #{tpu_custom_call.1} parent=1 // pred_fallthru
      _
    %v37 = vld [vmem:[#allocation2] sm:$0xff]
    %v38 = vld [vmem:[#allocation4] sm:$0xff]
    %v39 = vld [vmem:[#allocation4 + $0x8] sm:$0x3]
    %v40 = vld [vmem:[#allocation4 + $0x10] sm:$0x1]
    %v41 = vlaneseq
    %v42 = vshrl.u32 %v41, 7
    %v43 = vsub.s32 0, %v42
    %v44 = vrot.slane %v40, %v43
    %vm45 = vcmask 80896
    %v47 = vsel %vm45, %v37, 0
    %vm49 = vcmask 1041408
    %v51 = vsel %vm49, %v39, 0
    %53 = vmatprep.subr.mxu0 0.0
    %54 = vmatpush1.msra.mxu0 0.0
    %55 = vmatprep.subr.mxu0 0.0
    %56 = vmatpush1.msra.mxu0 0.0
    %57 = vmatprep.subr.mxu0 0.0
    %58 = vmatpush1.msra.mxu0 0.0
    %59 = vmatprep.subr.mxu0 0.0
    %60 = vmatpush1.msra.mxu0 0.0
    %61 = vmatprep.subr.mxu0 0.0
    %62 = vmatpush1.msra.mxu0 0.0
    %63 = vmatprep.subr.mxu0 0.0
    %64 = vmatpush1.msra.mxu0 0.0
    %65 = vmatprep.subr.mxu0 0.0
    %66 = vmatpush1.msra.mxu0 0.0
    %67 = vmatprep.subr.mxu0 0.0
    %68 = vmatpush1.msra.mxu0 0.0
    %69 = vmatprep.subr.mxu0 0.0
    %70 = vmatpush1.msra.mxu0 0.0
    %71 = vmatprep.subr.mxu0 0.0
    %72 = vmatpush1.msra.mxu0 0.0
    %73 = vmatprep.subr.mxu0 0.0
    %74 = vmatpush1.msra.mxu0 0.0
    %75 = vmatprep.subr.mxu0 0.0
    %76 = vmatpush1.msra.mxu0 0.0
    %77 = vmatprep.subr.mxu0 0.0
    %78 = vmatpush1.msra.mxu0 0.0
    %79 = vmatprep.subr.mxu0 0.0
    %80 = vmatpush1.msra.mxu0 0.0
    %81 = vmatprep.subr.mxu0 0.0
    %v82 = vand.u32 %v51, 4294901760
    %83 = vmatpush1.msra.mxu0 %v82
    %84 = vmatprep.subr.mxu0 0.0
    %v85 = vand.u32 %v38, 4294901760
    %86 = vmatpush1.msra.mxu0 %v85
    %87 = vmatprep.subr.mxu0 0.0
    %88 = vmatpush2.msra.mxu0 0.0
    %89 = vmatprep.subr.mxu0 0.0
    %90 = vmatpush2.msra.mxu0 0.0
    %91 = vmatprep.subr.mxu0 0.0
    %92 = vmatpush2.msra.mxu0 0.0
    %93 = vmatprep.subr.mxu0 0.0
    %94 = vmatpush2.msra.mxu0 0.0
    %95 = vmatprep.subr.mxu0 0.0
    %96 = vmatpush2.msra.mxu0 0.0
    %97 = vmatprep.subr.mxu0 0.0
    %98 = vmatpush2.msra.mxu0 0.0
    %99 = vmatprep.subr.mxu0 0.0
    %100 = vmatpush2.msra.mxu0 0.0
    %101 = vmatprep.subr.mxu0 0.0
    %102 = vmatpush2.msra.mxu0 0.0
    %103 = vmatprep.subr.mxu0 0.0
    %104 = vmatpush2.msra.mxu0 0.0
    %105 = vmatprep.subr.mxu0 0.0
    %106 = vmatpush2.msra.mxu0 0.0
    %107 = vmatprep.subr.mxu0 0.0
    %108 = vmatpush2.msra.mxu0 0.0
    %109 = vmatprep.subr.mxu0 0.0
    %110 = vmatpush2.msra.mxu0 0.0
    %111 = vmatprep.subr.mxu0 0.0
    %112 = vmatpush2.msra.mxu0 0.0
    %113 = vmatprep.subr.mxu0 0.0
    %114 = vmatpush2.msra.mxu0 0.0
    %115 = vmatprep.subr.mxu0 0.0
    %116 = vmatpush2.msra.mxu0 0.0
    %117 = vmatprep.subr.mxu0 0.0
    %118 = vmatpush2.msra.mxu0 0.0
    %119 = vmatprep.mubr.f32.mxu0 0.0
    %v120 = vand.u32 %v47, 4294901760
    %v121 = vsub.f32 %v47, %v120
    %v122 = vand.u32 %v121, 4294901760
    %v123 = vsub.f32 %v121, %v122
    %v124 = vand.u32 %v123, 4294901760
    %125 = vmatmul.mubr.f32.gmra.mxu0 %v124
    %v126 = vpop.f32.mrf.mxu0
    %v127 = vadd.f32 %v44, %v126
    %v128 = vpop.f32.mrf.mxu0
    %129 = vdwg.mxu0
    %130 = vmatprep.subr.mxu0 0.0
    %131 = vmatpush1.msra.mxu0 0.0
    %132 = vmatprep.subr.mxu0 0.0
    %133 = vmatpush1.msra.mxu0 0.0
    %134 = vmatprep.subr.mxu0 0.0
    %135 = vmatpush1.msra.mxu0 0.0
    %136 = vmatprep.subr.mxu0 0.0
    %137 = vmatpush1.msra.mxu0 0.0
    %138 = vmatprep.subr.mxu0 0.0
    %139 = vmatpush1.msra.mxu0 0.0
    %140 = vmatprep.subr.mxu0 0.0
    %141 = vmatpush1.msra.mxu0 0.0
    %142 = vmatprep.subr.mxu0 0.0
    %143 = vmatpush1.msra.mxu0 0.0
    %144 = vmatprep.subr.mxu0 0.0
    %145 = vmatpush1.msra.mxu0 0.0
    %146 = vmatprep.subr.mxu0 0.0
    %147 = vmatpush1.msra.mxu0 0.0
    %148 = vmatprep.subr.mxu0 0.0
    %149 = vmatpush1.msra.mxu0 0.0
    %150 = vmatprep.subr.mxu0 0.0
    %151 = vmatpush1.msra.mxu0 0.0
    %152 = vmatprep.subr.mxu0 0.0
    %153 = vmatpush1.msra.mxu0 0.0
    %154 = vmatprep.subr.mxu0 0.0
    %155 = vmatpush1.msra.mxu0 0.0
    %156 = vmatprep.subr.mxu0 0.0
    %157 = vmatpush1.msra.mxu0 0.0
    %158 = vmatprep.subr.mxu0 0.0
    %v159 = vand.u32 %v51, 4294901760
    %v160 = vsub.f32 %v51, %v159
    %v161 = vand.u32 %v160, 4294901760
    %v162 = vsub.f32 %v160, %v161
    %v163 = vand.u32 %v162, 4294901760
    %164 = vmatpush1.msra.mxu0 %v163
    %165 = vmatprep.subr.mxu0 0.0
    %v166 = vand.u32 %v38, 4294901760
    %v167 = vsub.f32 %v38, %v166
    %v168 = vand.u32 %v167, 4294901760
    %v169 = vsub.f32 %v167, %v168
    %v170 = vand.u32 %v169, 4294901760
    %171 = vmatpush1.msra.mxu0 %v170
    %172 = vmatprep.subr.mxu0 0.0
    %173 = vmatpush2.msra.mxu0 0.0
    %174 = vmatprep.subr.mxu0 0.0
    %175 = vmatpush2.msra.mxu0 0.0
    %176 = vmatprep.subr.mxu0 0.0
    %177 = vmatpush2.msra.mxu0 0.0
    %178 = vmatprep.subr.mxu0 0.0
    %179 = vmatpush2.msra.mxu0 0.0
    %180 = vmatprep.subr.mxu0 0.0
    %181 = vmatpush2.msra.mxu0 0.0
    %182 = vmatprep.subr.mxu0 0.0
    %183 = vmatpush2.msra.mxu0 0.0
    %184 = vmatprep.subr.mxu0 0.0
    %185 = vmatpush2.msra.mxu0 0.0
    %186 = vmatprep.subr.mxu0 0.0
    %187 = vmatpush2.msra.mxu0 0.0
    %188 = vmatprep.subr.mxu0 0.0
    %189 = vmatpush2.msra.mxu0 0.0
    %190 = vmatprep.subr.mxu0 0.0
    %191 = vmatpush2.msra.mxu0 0.0
    %192 = vmatprep.subr.mxu0 0.0
    %193 = vmatpush2.msra.mxu0 0.0
    %194 = vmatprep.subr.mxu0 0.0
    %195 = vmatpush2.msra.mxu0 0.0
    %196 = vmatprep.subr.mxu0 0.0
    %197 = vmatpush2.msra.mxu0 0.0
    %198 = vmatprep.subr.mxu0 0.0
    %199 = vmatpush2.msra.mxu0 0.0
    %200 = vmatprep.subr.mxu0 0.0
    %201 = vmatpush2.msra.mxu0 0.0
    %202 = vmatprep.subr.mxu0 0.0
    %203 = vmatpush2.msra.mxu0 0.0
    %204 = vmatprep.mubr.f32.mxu0 0.0
    %v205 = vand.u32 %v47, 4294901760
    %206 = vmatmul.mubr.f32.gmra.mxu0 %v205
    %v207 = vpop.f32.mrf.mxu0
    %v208 = vadd.f32 %v127, %v207
    %v209 = vpop.f32.mrf.mxu0
    %210 = vdwg.mxu0
    %211 = vmatprep.subr.mxu0 0.0
    %212 = vmatpush1.msra.mxu0 0.0
    %213 = vmatprep.subr.mxu0 0.0
    %214 = vmatpush1.msra.mxu0 0.0
    %215 = vmatprep.subr.mxu0 0.0
    %216 = vmatpush1.msra.mxu0 0.0
    %217 = vmatprep.subr.mxu0 0.0
    %218 = vmatpush1.msra.mxu0 0.0
    %219 = vmatprep.subr.mxu0 0.0
    %220 = vmatpush1.msra.mxu0 0.0
    %221 = vmatprep.subr.mxu0 0.0
    %222 = vmatpush1.msra.mxu0 0.0
    %223 = vmatprep.subr.mxu0 0.0
    %224 = vmatpush1.msra.mxu0 0.0
    %225 = vmatprep.subr.mxu0 0.0
    %226 = vmatpush1.msra.mxu0 0.0
    %227 = vmatprep.subr.mxu0 0.0
    %228 = vmatpush1.msra.mxu0 0.0
    %229 = vmatprep.subr.mxu0 0.0
    %230 = vmatpush1.msra.mxu0 0.0
    %231 = vmatprep.subr.mxu0 0.0
    %232 = vmatpush1.msra.mxu0 0.0
    %233 = vmatprep.subr.mxu0 0.0
    %234 = vmatpush1.msra.mxu0 0.0
    %235 = vmatprep.subr.mxu0 0.0
    %236 = vmatpush1.msra.mxu0 0.0
    %237 = vmatprep.subr.mxu0 0.0
    %238 = vmatpush1.msra.mxu0 0.0
    %239 = vmatprep.subr.mxu0 0.0
    %v240 = vand.u32 %v51, 4294901760
    %v241 = vsub.f32 %v51, %v240
    %242 = vmatpush1.msra.mxu0 %v241
    %243 = vmatprep.subr.mxu0 0.0
    %v244 = vand.u32 %v38, 4294901760
    %v245 = vsub.f32 %v38, %v244
    %246 = vmatpush1.msra.mxu0 %v245
    %247 = vmatprep.subr.mxu0 0.0
    %248 = vmatpush2.msra.mxu0 0.0
    %249 = vmatprep.subr.mxu0 0.0
    %250 = vmatpush2.msra.mxu0 0.0
    %251 = vmatprep.subr.mxu0 0.0
    %252 = vmatpush2.msra.mxu0 0.0
    %253 = vmatprep.subr.mxu0 0.0
    %254 = vmatpush2.msra.mxu0 0.0
    %255 = vmatprep.subr.mxu0 0.0
    %256 = vmatpush2.msra.mxu0 0.0
    %257 = vmatprep.subr.mxu0 0.0
    %258 = vmatpush2.msra.mxu0 0.0
    %259 = vmatprep.subr.mxu0 0.0
    %260 = vmatpush2.msra.mxu0 0.0
    %261 = vmatprep.subr.mxu0 0.0
    %262 = vmatpush2.msra.mxu0 0.0
    %263 = vmatprep.subr.mxu0 0.0
    %264 = vmatpush2.msra.mxu0 0.0
    %265 = vmatprep.subr.mxu0 0.0
    %266 = vmatpush2.msra.mxu0 0.0
    %267 = vmatprep.subr.mxu0 0.0
    %268 = vmatpush2.msra.mxu0 0.0
    %269 = vmatprep.subr.mxu0 0.0
    %270 = vmatpush2.msra.mxu0 0.0
    %271 = vmatprep.subr.mxu0 0.0
    %272 = vmatpush2.msra.mxu0 0.0
    %273 = vmatprep.subr.mxu0 0.0
    %274 = vmatpush2.msra.mxu0 0.0
    %275 = vmatprep.subr.mxu0 0.0
    %276 = vmatpush2.msra.mxu0 0.0
    %277 = vmatprep.subr.mxu0 0.0
    %278 = vmatpush2.msra.mxu0 0.0
    %279 = vmatprep.mubr.f32.mxu0 0.0
    %v280 = vand.u32 %v47, 4294901760
    %v281 = vsub.f32 %v47, %v280
    %282 = vmatmul.mubr.f32.gmra.mxu0 %v281
    %v283 = vpop.f32.mrf.mxu0
    %v284 = vadd.f32 %v208, %v283
    %v285 = vpop.f32.mrf.mxu0
    %286 = vdwg.mxu0
    %287 = vmatprep.subr.mxu0 0.0
    %288 = vmatpush1.msra.mxu0 0.0
    %289 = vmatprep.subr.mxu0 0.0
    %290 = vmatpush1.msra.mxu0 0.0
    %291 = vmatprep.subr.mxu0 0.0
    %292 = vmatpush1.msra.mxu0 0.0
    %293 = vmatprep.subr.mxu0 0.0
    %294 = vmatpush1.msra.mxu0 0.0
    %295 = vmatprep.subr.mxu0 0.0
    %296 = vmatpush1.msra.mxu0 0.0
    %297 = vmatprep.subr.mxu0 0.0
    %298 = vmatpush1.msra.mxu0 0.0
    %299 = vmatprep.subr.mxu0 0.0
    %300 = vmatpush1.msra.mxu0 0.0
    %301 = vmatprep.subr.mxu0 0.0
    %302 = vmatpush1.msra.mxu0 0.0
    %303 = vmatprep.subr.mxu0 0.0
    %304 = vmatpush1.msra.mxu0 0.0
    %305 = vmatprep.subr.mxu0 0.0
    %306 = vmatpush1.msra.mxu0 0.0
    %307 = vmatprep.subr.mxu0 0.0
    %308 = vmatpush1.msra.mxu0 0.0
    %309 = vmatprep.subr.mxu0 0.0
    %310 = vmatpush1.msra.mxu0 0.0
    %311 = vmatprep.subr.mxu0 0.0
    %312 = vmatpush1.msra.mxu0 0.0
    %313 = vmatprep.subr.mxu0 0.0
    %314 = vmatpush1.msra.mxu0 0.0
    %315 = vmatprep.subr.mxu0 0.0
    %v316 = vand.u32 %v51, 4294901760
    %317 = vmatpush1.msra.mxu0 %v316
    %318 = vmatprep.subr.mxu0 0.0
    %v319 = vand.u32 %v38, 4294901760
    %320 = vmatpush1.msra.mxu0 %v319
    %321 = vmatprep.subr.mxu0 0.0
    %322 = vmatpush2.msra.mxu0 0.0
    %323 = vmatprep.subr.mxu0 0.0
    %324 = vmatpush2.msra.mxu0 0.0
    %325 = vmatprep.subr.mxu0 0.0
    %326 = vmatpush2.msra.mxu0 0.0
    %327 = vmatprep.subr.mxu0 0.0
    %328 = vmatpush2.msra.mxu0 0.0
    %329 = vmatprep.subr.mxu0 0.0
    %330 = vmatpush2.msra.mxu0 0.0
    %331 = vmatprep.subr.mxu0 0.0
    %332 = vmatpush2.msra.mxu0 0.0
    %333 = vmatprep.subr.mxu0 0.0
    %334 = vmatpush2.msra.mxu0 0.0
    %335 = vmatprep.subr.mxu0 0.0
    %336 = vmatpush2.msra.mxu0 0.0
    %337 = vmatprep.subr.mxu0 0.0
    %338 = vmatpush2.msra.mxu0 0.0
    %339 = vmatprep.subr.mxu0 0.0
    %340 = vmatpush2.msra.mxu0 0.0
    %341 = vmatprep.subr.mxu0 0.0
    %342 = vmatpush2.msra.mxu0 0.0
    %343 = vmatprep.subr.mxu0 0.0
    %344 = vmatpush2.msra.mxu0 0.0
    %345 = vmatprep.subr.mxu0 0.0
    %346 = vmatpush2.msra.mxu0 0.0
    %347 = vmatprep.subr.mxu0 0.0
    %348 = vmatpush2.msra.mxu0 0.0
    %349 = vmatprep.subr.mxu0 0.0
    %350 = vmatpush2.msra.mxu0 0.0
    %351 = vmatprep.subr.mxu0 0.0
    %352 = vmatpush2.msra.mxu0 0.0
    %353 = vmatprep.mubr.f32.mxu0 0.0
    %v354 = vand.u32 %v47, 4294901760
    %v355 = vsub.f32 %v47, %v354
    %v356 = vand.u32 %v355, 4294901760
    %357 = vmatmul.mubr.f32.gmra.mxu0 %v356
    %v358 = vpop.f32.mrf.mxu0
    %v359 = vadd.f32 %v284, %v358
    %v360 = vpop.f32.mrf.mxu0
    %361 = vdwg.mxu0
    %362 = vmatprep.subr.mxu0 0.0
    %363 = vmatpush1.msra.mxu0 0.0
    %364 = vmatprep.subr.mxu0 0.0
    %365 = vmatpush1.msra.mxu0 0.0
    %366 = vmatprep.subr.mxu0 0.0
    %367 = vmatpush1.msra.mxu0 0.0
    %368 = vmatprep.subr.mxu0 0.0
    %369 = vmatpush1.msra.mxu0 0.0
    %370 = vmatprep.subr.mxu0 0.0
    %371 = vmatpush1.msra.mxu0 0.0
    %372 = vmatprep.subr.mxu0 0.0
    %373 = vmatpush1.msra.mxu0 0.0
    %374 = vmatprep.subr.mxu0 0.0
    %375 = vmatpush1.msra.mxu0 0.0
    %376 = vmatprep.subr.mxu0 0.0
    %377 = vmatpush1.msra.mxu0 0.0
    %378 = vmatprep.subr.mxu0 0.0
    %379 = vmatpush1.msra.mxu0 0.0
    %380 = vmatprep.subr.mxu0 0.0
    %381 = vmatpush1.msra.mxu0 0.0
    %382 = vmatprep.subr.mxu0 0.0
    %383 = vmatpush1.msra.mxu0 0.0
    %384 = vmatprep.subr.mxu0 0.0
    %385 = vmatpush1.msra.mxu0 0.0
    %386 = vmatprep.subr.mxu0 0.0
    %387 = vmatpush1.msra.mxu0 0.0
    %388 = vmatprep.subr.mxu0 0.0
    %389 = vmatpush1.msra.mxu0 0.0
    %390 = vmatprep.subr.mxu0 0.0
    %v391 = vand.u32 %v51, 4294901760
    %v392 = vsub.f32 %v51, %v391
    %v393 = vand.u32 %v392, 4294901760
    %394 = vmatpush1.msra.mxu0 %v393
    %395 = vmatprep.subr.mxu0 0.0
    %v396 = vand.u32 %v38, 4294901760
    %v397 = vsub.f32 %v38, %v396
    %v398 = vand.u32 %v397, 4294901760
    %399 = vmatpush1.msra.mxu0 %v398
    %400 = vmatprep.subr.mxu0 0.0
    %401 = vmatpush2.msra.mxu0 0.0
    %402 = vmatprep.subr.mxu0 0.0
    %403 = vmatpush2.msra.mxu0 0.0
    %404 = vmatprep.subr.mxu0 0.0
    %405 = vmatpush2.msra.mxu0 0.0
    %406 = vmatprep.subr.mxu0 0.0
    %407 = vmatpush2.msra.mxu0 0.0
    %408 = vmatprep.subr.mxu0 0.0
    %409 = vmatpush2.msra.mxu0 0.0
    %410 = vmatprep.subr.mxu0 0.0
    %411 = vmatpush2.msra.mxu0 0.0
    %412 = vmatprep.subr.mxu0 0.0
    %413 = vmatpush2.msra.mxu0 0.0
    %414 = vmatprep.subr.mxu0 0.0
    %415 = vmatpush2.msra.mxu0 0.0
    %416 = vmatprep.subr.mxu0 0.0
    %417 = vmatpush2.msra.mxu0 0.0
    %418 = vmatprep.subr.mxu0 0.0
    %419 = vmatpush2.msra.mxu0 0.0
    %420 = vmatprep.subr.mxu0 0.0
    %421 = vmatpush2.msra.mxu0 0.0
    %422 = vmatprep.subr.mxu0 0.0
    %423 = vmatpush2.msra.mxu0 0.0
    %424 = vmatprep.subr.mxu0 0.0
    %425 = vmatpush2.msra.mxu0 0.0
    %426 = vmatprep.subr.mxu0 0.0
    %427 = vmatpush2.msra.mxu0 0.0
    %428 = vmatprep.subr.mxu0 0.0
    %429 = vmatpush2.msra.mxu0 0.0
    %430 = vmatprep.subr.mxu0 0.0
    %431 = vmatpush2.msra.mxu0 0.0
    %432 = vmatprep.mubr.f32.mxu0 0.0
    %v433 = vand.u32 %v47, 4294901760
    %434 = vmatmul.mubr.f32.gmra.mxu0 %v433
    %v435 = vpop.f32.mrf.mxu0
    %v436 = vadd.f32 %v359, %v435
    %v437 = vpop.f32.mrf.mxu0
    %438 = vdwg.mxu0
    %439 = vmatprep.subr.mxu0 0.0
    %440 = vmatpush1.msra.mxu0 0.0
    %441 = vmatprep.subr.mxu0 0.0
    %442 = vmatpush1.msra.mxu0 0.0
    %443 = vmatprep.subr.mxu0 0.0
    %444 = vmatpush1.msra.mxu0 0.0
    %445 = vmatprep.subr.mxu0 0.0
    %446 = vmatpush1.msra.mxu0 0.0
    %447 = vmatprep.subr.mxu0 0.0
    %448 = vmatpush1.msra.mxu0 0.0
    %449 = vmatprep.subr.mxu0 0.0
    %450 = vmatpush1.msra.mxu0 0.0
    %451 = vmatprep.subr.mxu0 0.0
    %452 = vmatpush1.msra.mxu0 0.0
    %453 = vmatprep.subr.mxu0 0.0
    %454 = vmatpush1.msra.mxu0 0.0
    %455 = vmatprep.subr.mxu0 0.0
    %456 = vmatpush1.msra.mxu0 0.0
    %457 = vmatprep.subr.mxu0 0.0
    %458 = vmatpush1.msra.mxu0 0.0
    %459 = vmatprep.subr.mxu0 0.0
    %460 = vmatpush1.msra.mxu0 0.0
    %461 = vmatprep.subr.mxu0 0.0
    %462 = vmatpush1.msra.mxu0 0.0
    %463 = vmatprep.subr.mxu0 0.0
    %464 = vmatpush1.msra.mxu0 0.0
    %465 = vmatprep.subr.mxu0 0.0
    %466 = vmatpush1.msra.mxu0 0.0
    %467 = vmatprep.subr.mxu0 0.0
    %v468 = vand.u32 %v51, 4294901760
    %469 = vmatpush1.msra.mxu0 %v468
    %470 = vmatprep.subr.mxu0 0.0
    %v471 = vand.u32 %v38, 4294901760
    %472 = vmatpush1.msra.mxu0 %v471
    %473 = vmatprep.subr.mxu0 0.0
    %474 = vmatpush2.msra.mxu0 0.0
    %475 = vmatprep.subr.mxu0 0.0
    %476 = vmatpush2.msra.mxu0 0.0
    %477 = vmatprep.subr.mxu0 0.0
    %478 = vmatpush2.msra.mxu0 0.0
    %479 = vmatprep.subr.mxu0 0.0
    %480 = vmatpush2.msra.mxu0 0.0
    %481 = vmatprep.subr.mxu0 0.0
    %482 = vmatpush2.msra.mxu0 0.0
    %483 = vmatprep.subr.mxu0 0.0
    %484 = vmatpush2.msra.mxu0 0.0
    %485 = vmatprep.subr.mxu0 0.0
    %486 = vmatpush2.msra.mxu0 0.0
    %487 = vmatprep.subr.mxu0 0.0
    %488 = vmatpush2.msra.mxu0 0.0
    %489 = vmatprep.subr.mxu0 0.0
    %490 = vmatpush2.msra.mxu0 0.0
    %491 = vmatprep.subr.mxu0 0.0
    %492 = vmatpush2.msra.mxu0 0.0
    %493 = vmatprep.subr.mxu0 0.0
    %494 = vmatpush2.msra.mxu0 0.0
    %495 = vmatprep.subr.mxu0 0.0
    %496 = vmatpush2.msra.mxu0 0.0
    %497 = vmatprep.subr.mxu0 0.0
    %498 = vmatpush2.msra.mxu0 0.0
    %499 = vmatprep.subr.mxu0 0.0
    %500 = vmatpush2.msra.mxu0 0.0
    %501 = vmatprep.subr.mxu0 0.0
    %502 = vmatpush2.msra.mxu0 0.0
    %503 = vmatprep.subr.mxu0 0.0
    %504 = vmatpush2.msra.mxu0 0.0
    %505 = vmatprep.mubr.f32.mxu0 0.0
    %v506 = vand.u32 %v47, 4294901760
    %507 = vmatmul.mubr.f32.gmra.mxu0 %v506
    %v508 = vpop.f32.mrf.mxu0
    %v509 = vadd.f32 %v436, %v508
    %v510 = vpop.f32.mrf.mxu0
    %511 = vdwg.mxu0
    %v512 = vmax.f32 %v509, 0.0
    %v513 = vld [vmem:[#allocation4 + $0x18] sm:$0xff]
    %v514 = vld [vmem:[#allocation4 + $0x20] sm:$0xff]
    %v515 = vld [vmem:[#allocation4 + $0x28] sm:$0xff]
    %v516 = vld [vmem:[#allocation4 + $0x30] sm:$0xff]
    %v517 = vld [vmem:[#allocation4 + $0x38] sm:$0x1]
    %v518 = vlaneseq
    %v519 = vshrl.u32 %v518, 7
    %v520 = vsub.s32 0, %v519
    %v521 = vrot.slane %v517, %v520
    %vm522 = vcmask 261120
    %v524 = vsel %vm522, %v512, 0
    %526 = vmatprep.subr.mxu0 0.0
    %527 = vmatpush1.msra.mxu0 0.0
    %528 = vmatprep.subr.mxu0 0.0
    %529 = vmatpush1.msra.mxu0 0.0
    %530 = vmatprep.subr.mxu0 0.0
    %531 = vmatpush1.msra.mxu0 0.0
    %532 = vmatprep.subr.mxu0 0.0
    %533 = vmatpush1.msra.mxu0 0.0
    %534 = vmatprep.subr.mxu0 0.0
    %535 = vmatpush1.msra.mxu0 0.0
    %536 = vmatprep.subr.mxu0 0.0
    %537 = vmatpush1.msra.mxu0 0.0
    %538 = vmatprep.subr.mxu0 0.0
    %539 = vmatpush1.msra.mxu0 0.0
    %540 = vmatprep.subr.mxu0 0.0
    %541 = vmatpush1.msra.mxu0 0.0
    %542 = vmatprep.subr.mxu0 0.0
    %543 = vmatpush1.msra.mxu0 0.0
    %544 = vmatprep.subr.mxu0 0.0
    %545 = vmatpush1.msra.mxu0 0.0
    %546 = vmatprep.subr.mxu0 0.0
    %547 = vmatpush1.msra.mxu0 0.0
    %548 = vmatprep.subr.mxu0 0.0
    %549 = vmatpush1.msra.mxu0 0.0
    %550 = vmatprep.subr.mxu0 0.0
    %v551 = vand.u32 %v516, 4294901760
    %552 = vmatpush1.msra.mxu0 %v551
    %553 = vmatprep.subr.mxu0 0.0
    %v554 = vand.u32 %v515, 4294901760
    %555 = vmatpush1.msra.mxu0 %v554
    %556 = vmatprep.subr.mxu0 0.0
    %v557 = vand.u32 %v514, 4294901760
    %558 = vmatpush1.msra.mxu0 %v557
    %559 = vmatprep.subr.mxu0 0.0
    %v560 = vand.u32 %v513, 4294901760
    %561 = vmatpush1.msra.mxu0 %v560
    %562 = vmatprep.subr.mxu0 0.0
    %563 = vmatpush2.msra.mxu0 0.0
    %564 = vmatprep.subr.mxu0 0.0
    %565 = vmatpush2.msra.mxu0 0.0
    %566 = vmatprep.subr.mxu0 0.0
    %567 = vmatpush2.msra.mxu0 0.0
    %568 = vmatprep.subr.mxu0 0.0
    %569 = vmatpush2.msra.mxu0 0.0
    %570 = vmatprep.subr.mxu0 0.0
    %571 = vmatpush2.msra.mxu0 0.0
    %572 = vmatprep.subr.mxu0 0.0
    %573 = vmatpush2.msra.mxu0 0.0
    %574 = vmatprep.subr.mxu0 0.0
    %575 = vmatpush2.msra.mxu0 0.0
    %576 = vmatprep.subr.mxu0 0.0
    %577 = vmatpush2.msra.mxu0 0.0
    %578 = vmatprep.subr.mxu0 0.0
    %579 = vmatpush2.msra.mxu0 0.0
    %580 = vmatprep.subr.mxu0 0.0
    %581 = vmatpush2.msra.mxu0 0.0
    %582 = vmatprep.subr.mxu0 0.0
    %583 = vmatpush2.msra.mxu0 0.0
    %584 = vmatprep.subr.mxu0 0.0
    %585 = vmatpush2.msra.mxu0 0.0
    %586 = vmatprep.subr.mxu0 0.0
    %587 = vmatpush2.msra.mxu0 0.0
    %588 = vmatprep.subr.mxu0 0.0
    %589 = vmatpush2.msra.mxu0 0.0
    %590 = vmatprep.subr.mxu0 0.0
    %591 = vmatpush2.msra.mxu0 0.0
    %592 = vmatprep.subr.mxu0 0.0
    %593 = vmatpush2.msra.mxu0 0.0
    %594 = vmatprep.mubr.f32.mxu0 0.0
    %v595 = vand.u32 %v524, 4294901760
    %v596 = vsub.f32 %v524, %v595
    %v597 = vand.u32 %v596, 4294901760
    %v598 = vsub.f32 %v596, %v597
    %v599 = vand.u32 %v598, 4294901760
    %600 = vmatmul.mubr.f32.gmra.mxu0 %v599
    %v601 = vpop.f32.mrf.mxu0
    %v602 = vadd.f32 %v521, %v601
    %v603 = vpop.f32.mrf.mxu0
    %604 = vdwg.mxu0
    %605 = vmatprep.subr.mxu0 0.0
    %606 = vmatpush1.msra.mxu0 0.0
    %607 = vmatprep.subr.mxu0 0.0
    %608 = vmatpush1.msra.mxu0 0.0
    %609 = vmatprep.subr.mxu0 0.0
    %610 = vmatpush1.msra.mxu0 0.0
    %611 = vmatprep.subr.mxu0 0.0
    %612 = vmatpush1.msra.mxu0 0.0
    %613 = vmatprep.subr.mxu0 0.0
    %614 = vmatpush1.msra.mxu0 0.0
    %615 = vmatprep.subr.mxu0 0.0
    %616 = vmatpush1.msra.mxu0 0.0
    %617 = vmatprep.subr.mxu0 0.0
    %618 = vmatpush1.msra.mxu0 0.0
    %619 = vmatprep.subr.mxu0 0.0
    %620 = vmatpush1.msra.mxu0 0.0
    %621 = vmatprep.subr.mxu0 0.0
    %622 = vmatpush1.msra.mxu0 0.0
    %623 = vmatprep.subr.mxu0 0.0
    %624 = vmatpush1.msra.mxu0 0.0
    %625 = vmatprep.subr.mxu0 0.0
    %626 = vmatpush1.msra.mxu0 0.0
    %627 = vmatprep.subr.mxu0 0.0
    %628 = vmatpush1.msra.mxu0 0.0
    %629 = vmatprep.subr.mxu0 0.0
    %v630 = vand.u32 %v516, 4294901760
    %v631 = vsub.f32 %v516, %v630
    %v632 = vand.u32 %v631, 4294901760
    %v633 = vsub.f32 %v631, %v632
    %v634 = vand.u32 %v633, 4294901760
    %635 = vmatpush1.msra.mxu0 %v634
    %636 = vmatprep.subr.mxu0 0.0
    %v637 = vand.u32 %v515, 4294901760
    %v638 = vsub.f32 %v515, %v637
    %v639 = vand.u32 %v638, 4294901760
    %v640 = vsub.f32 %v638, %v639
    %v641 = vand.u32 %v640, 4294901760
    %642 = vmatpush1.msra.mxu0 %v641
    %643 = vmatprep.subr.mxu0 0.0
    %v644 = vand.u32 %v514, 4294901760
    %v645 = vsub.f32 %v514, %v644
    %v646 = vand.u32 %v645, 4294901760
    %v647 = vsub.f32 %v645, %v646
    %v648 = vand.u32 %v647, 4294901760
    %649 = vmatpush1.msra.mxu0 %v648
    %650 = vmatprep.subr.mxu0 0.0
    %v651 = vand.u32 %v513, 4294901760
    %v652 = vsub.f32 %v513, %v651
    %v653 = vand.u32 %v652, 4294901760
    %v654 = vsub.f32 %v652, %v653
    %v655 = vand.u32 %v654, 4294901760
    %656 = vmatpush1.msra.mxu0 %v655
    %657 = vmatprep.subr.mxu0 0.0
    %658 = vmatpush2.msra.mxu0 0.0
    %659 = vmatprep.subr.mxu0 0.0
    %660 = vmatpush2.msra.mxu0 0.0
    %661 = vmatprep.subr.mxu0 0.0
    %662 = vmatpush2.msra.mxu0 0.0
    %663 = vmatprep.subr.mxu0 0.0
    %664 = vmatpush2.msra.mxu0 0.0
    %665 = vmatprep.subr.mxu0 0.0
    %666 = vmatpush2.msra.mxu0 0.0
    %667 = vmatprep.subr.mxu0 0.0
    %668 = vmatpush2.msra.mxu0 0.0
    %669 = vmatprep.subr.mxu0 0.0
    %670 = vmatpush2.msra.mxu0 0.0
    %671 = vmatprep.subr.mxu0 0.0
    %672 = vmatpush2.msra.mxu0 0.0
    %673 = vmatprep.subr.mxu0 0.0
    %674 = vmatpush2.msra.mxu0 0.0
    %675 = vmatprep.subr.mxu0 0.0
    %676 = vmatpush2.msra.mxu0 0.0
    %677 = vmatprep.subr.mxu0 0.0
    %678 = vmatpush2.msra.mxu0 0.0
    %679 = vmatprep.subr.mxu0 0.0
    %680 = vmatpush2.msra.mxu0 0.0
    %681 = vmatprep.subr.mxu0 0.0
    %682 = vmatpush2.msra.mxu0 0.0
    %683 = vmatprep.subr.mxu0 0.0
    %684 = vmatpush2.msra.mxu0 0.0
    %685 = vmatprep.subr.mxu0 0.0
    %686 = vmatpush2.msra.mxu0 0.0
    %687 = vmatprep.subr.mxu0 0.0
    %688 = vmatpush2.msra.mxu0 0.0
    %689 = vmatprep.mubr.f32.mxu0 0.0
    %v690 = vand.u32 %v524, 4294901760
    %691 = vmatmul.mubr.f32.gmra.mxu0 %v690
    %v692 = vpop.f32.mrf.mxu0
    %v693 = vadd.f32 %v602, %v692
    %v694 = vpop.f32.mrf.mxu0
    %695 = vdwg.mxu0
    %696 = vmatprep.subr.mxu0 0.0
    %697 = vmatpush1.msra.mxu0 0.0
    %698 = vmatprep.subr.mxu0 0.0
    %699 = vmatpush1.msra.mxu0 0.0
    %700 = vmatprep.subr.mxu0 0.0
    %701 = vmatpush1.msra.mxu0 0.0
    %702 = vmatprep.subr.mxu0 0.0
    %703 = vmatpush1.msra.mxu0 0.0
    %704 = vmatprep.subr.mxu0 0.0
    %705 = vmatpush1.msra.mxu0 0.0
    %706 = vmatprep.subr.mxu0 0.0
    %707 = vmatpush1.msra.mxu0 0.0
    %708 = vmatprep.subr.mxu0 0.0
    %709 = vmatpush1.msra.mxu0 0.0
    %710 = vmatprep.subr.mxu0 0.0
    %711 = vmatpush1.msra.mxu0 0.0
    %712 = vmatprep.subr.mxu0 0.0
    %713 = vmatpush1.msra.mxu0 0.0
    %714 = vmatprep.subr.mxu0 0.0
    %715 = vmatpush1.msra.mxu0 0.0
    %716 = vmatprep.subr.mxu0 0.0
    %717 = vmatpush1.msra.mxu0 0.0
    %718 = vmatprep.subr.mxu0 0.0
    %719 = vmatpush1.msra.mxu0 0.0
    %720 = vmatprep.subr.mxu0 0.0
    %v721 = vand.u32 %v516, 4294901760
    %v722 = vsub.f32 %v516, %v721
    %723 = vmatpush1.msra.mxu0 %v722
    %724 = vmatprep.subr.mxu0 0.0
    %v725 = vand.u32 %v515, 4294901760
    %v726 = vsub.f32 %v515, %v725
    %727 = vmatpush1.msra.mxu0 %v726
    %728 = vmatprep.subr.mxu0 0.0
    %v729 = vand.u32 %v514, 4294901760
    %v730 = vsub.f32 %v514, %v729
    %731 = vmatpush1.msra.mxu0 %v730
    %732 = vmatprep.subr.mxu0 0.0
    %v733 = vand.u32 %v513, 4294901760
    %v734 = vsub.f32 %v513, %v733
    %735 = vmatpush1.msra.mxu0 %v734
    %736 = vmatprep.subr.mxu0 0.0
    %737 = vmatpush2.msra.mxu0 0.0
    %738 = vmatprep.subr.mxu0 0.0
    %739 = vmatpush2.msra.mxu0 0.0
    %740 = vmatprep.subr.mxu0 0.0
    %741 = vmatpush2.msra.mxu0 0.0
    %742 = vmatprep.subr.mxu0 0.0
    %743 = vmatpush2.msra.mxu0 0.0
    %744 = vmatprep.subr.mxu0 0.0
    %745 = vmatpush2.msra.mxu0 0.0
    %746 = vmatprep.subr.mxu0 0.0
    %747 = vmatpush2.msra.mxu0 0.0
    %748 = vmatprep.subr.mxu0 0.0
    %749 = vmatpush2.msra.mxu0 0.0
    %750 = vmatprep.subr.mxu0 0.0
    %751 = vmatpush2.msra.mxu0 0.0
    %752 = vmatprep.subr.mxu0 0.0
    %753 = vmatpush2.msra.mxu0 0.0
    %754 = vmatprep.subr.mxu0 0.0
    %755 = vmatpush2.msra.mxu0 0.0
    %756 = vmatprep.subr.mxu0 0.0
    %757 = vmatpush2.msra.mxu0 0.0
    %758 = vmatprep.subr.mxu0 0.0
    %759 = vmatpush2.msra.mxu0 0.0
    %760 = vmatprep.subr.mxu0 0.0
    %761 = vmatpush2.msra.mxu0 0.0
    %762 = vmatprep.subr.mxu0 0.0
    %763 = vmatpush2.msra.mxu0 0.0
    %764 = vmatprep.subr.mxu0 0.0
    %765 = vmatpush2.msra.mxu0 0.0
    %766 = vmatprep.subr.mxu0 0.0
    %767 = vmatpush2.msra.mxu0 0.0
    %768 = vmatprep.mubr.f32.mxu0 0.0
    %v769 = vand.u32 %v524, 4294901760
    %v770 = vsub.f32 %v524, %v769
    %771 = vmatmul.mubr.f32.gmra.mxu0 %v770
    %v772 = vpop.f32.mrf.mxu0
    %v773 = vadd.f32 %v693, %v772
    %v774 = vpop.f32.mrf.mxu0
    %775 = vdwg.mxu0
    %776 = vmatprep.subr.mxu0 0.0
    %777 = vmatpush1.msra.mxu0 0.0
    %778 = vmatprep.subr.mxu0 0.0
    %779 = vmatpush1.msra.mxu0 0.0
    %780 = vmatprep.subr.mxu0 0.0
    %781 = vmatpush1.msra.mxu0 0.0
    %782 = vmatprep.subr.mxu0 0.0
    %783 = vmatpush1.msra.mxu0 0.0
    %784 = vmatprep.subr.mxu0 0.0
    %785 = vmatpush1.msra.mxu0 0.0
    %786 = vmatprep.subr.mxu0 0.0
    %787 = vmatpush1.msra.mxu0 0.0
    %788 = vmatprep.subr.mxu0 0.0
    %789 = vmatpush1.msra.mxu0 0.0
    %790 = vmatprep.subr.mxu0 0.0
    %791 = vmatpush1.msra.mxu0 0.0
    %792 = vmatprep.subr.mxu0 0.0
    %793 = vmatpush1.msra.mxu0 0.0
    %794 = vmatprep.subr.mxu0 0.0
    %795 = vmatpush1.msra.mxu0 0.0
    %796 = vmatprep.subr.mxu0 0.0
    %797 = vmatpush1.msra.mxu0 0.0
    %798 = vmatprep.subr.mxu0 0.0
    %799 = vmatpush1.msra.mxu0 0.0
    %800 = vmatprep.subr.mxu0 0.0
    %v801 = vand.u32 %v516, 4294901760
    %802 = vmatpush1.msra.mxu0 %v801
    %803 = vmatprep.subr.mxu0 0.0
    %v804 = vand.u32 %v515, 4294901760
    %805 = vmatpush1.msra.mxu0 %v804
    %806 = vmatprep.subr.mxu0 0.0
    %v807 = vand.u32 %v514, 4294901760
    %808 = vmatpush1.msra.mxu0 %v807
    %809 = vmatprep.subr.mxu0 0.0
    %v810 = vand.u32 %v513, 4294901760
    %811 = vmatpush1.msra.mxu0 %v810
    %812 = vmatprep.subr.mxu0 0.0
    %813 = vmatpush2.msra.mxu0 0.0
    %814 = vmatprep.subr.mxu0 0.0
    %815 = vmatpush2.msra.mxu0 0.0
    %816 = vmatprep.subr.mxu0 0.0
    %817 = vmatpush2.msra.mxu0 0.0
    %818 = vmatprep.subr.mxu0 0.0
    %819 = vmatpush2.msra.mxu0 0.0
    %820 = vmatprep.subr.mxu0 0.0
    %821 = vmatpush2.msra.mxu0 0.0
    %822 = vmatprep.subr.mxu0 0.0
    %823 = vmatpush2.msra.mxu0 0.0
    %824 = vmatprep.subr.mxu0 0.0
    %825 = vmatpush2.msra.mxu0 0.0
    %826 = vmatprep.subr.mxu0 0.0
    %827 = vmatpush2.msra.mxu0 0.0
    %828 = vmatprep.subr.mxu0 0.0
    %829 = vmatpush2.msra.mxu0 0.0
    %830 = vmatprep.subr.mxu0 0.0
    %831 = vmatpush2.msra.mxu0 0.0
    %832 = vmatprep.subr.mxu0 0.0
    %833 = vmatpush2.msra.mxu0 0.0
    %834 = vmatprep.subr.mxu0 0.0
    %835 = vmatpush2.msra.mxu0 0.0
    %836 = vmatprep.subr.mxu0 0.0
    %837 = vmatpush2.msra.mxu0 0.0
    %838 = vmatprep.subr.mxu0 0.0
    %839 = vmatpush2.msra.mxu0 0.0
    %840 = vmatprep.subr.mxu0 0.0
    %841 = vmatpush2.msra.mxu0 0.0
    %842 = vmatprep.subr.mxu0 0.0
    %843 = vmatpush2.msra.mxu0 0.0
    %844 = vmatprep.mubr.f32.mxu0 0.0
    %v845 = vand.u32 %v524, 4294901760
    %v846 = vsub.f32 %v524, %v845
    %v847 = vand.u32 %v846, 4294901760
    %848 = vmatmul.mubr.f32.gmra.mxu0 %v847
    %v849 = vpop.f32.mrf.mxu0
    %v850 = vadd.f32 %v773, %v849
    %v851 = vpop.f32.mrf.mxu0
    %852 = vdwg.mxu0
    %853 = vmatprep.subr.mxu0 0.0
    %854 = vmatpush1.msra.mxu0 0.0
    %855 = vmatprep.subr.mxu0 0.0
    %856 = vmatpush1.msra.mxu0 0.0
    %857 = vmatprep.subr.mxu0 0.0
    %858 = vmatpush1.msra.mxu0 0.0
    %859 = vmatprep.subr.mxu0 0.0
    %860 = vmatpush1.msra.mxu0 0.0
    %861 = vmatprep.subr.mxu0 0.0
    %862 = vmatpush1.msra.mxu0 0.0
    %863 = vmatprep.subr.mxu0 0.0
    %864 = vmatpush1.msra.mxu0 0.0
    %865 = vmatprep.subr.mxu0 0.0
    %866 = vmatpush1.msra.mxu0 0.0
    %867 = vmatprep.subr.mxu0 0.0
    %868 = vmatpush1.msra.mxu0 0.0
    %869 = vmatprep.subr.mxu0 0.0
    %870 = vmatpush1.msra.mxu0 0.0
    %871 = vmatprep.subr.mxu0 0.0
    %872 = vmatpush1.msra.mxu0 0.0
    %873 = vmatprep.subr.mxu0 0.0
    %874 = vmatpush1.msra.mxu0 0.0
    %875 = vmatprep.subr.mxu0 0.0
    %876 = vmatpush1.msra.mxu0 0.0
    %877 = vmatprep.subr.mxu0 0.0
    %v878 = vand.u32 %v516, 4294901760
    %v879 = vsub.f32 %v516, %v878
    %v880 = vand.u32 %v879, 4294901760
    %881 = vmatpush1.msra.mxu0 %v880
    %882 = vmatprep.subr.mxu0 0.0
    %v883 = vand.u32 %v515, 4294901760
    %v884 = vsub.f32 %v515, %v883
    %v885 = vand.u32 %v884, 4294901760
    %886 = vmatpush1.msra.mxu0 %v885
    %887 = vmatprep.subr.mxu0 0.0
    %v888 = vand.u32 %v514, 4294901760
    %v889 = vsub.f32 %v514, %v888
    %v890 = vand.u32 %v889, 4294901760
    %891 = vmatpush1.msra.mxu0 %v890
    %892 = vmatprep.subr.mxu0 0.0
    %v893 = vand.u32 %v513, 4294901760
    %v894 = vsub.f32 %v513, %v893
    %v895 = vand.u32 %v894, 4294901760
    %896 = vmatpush1.msra.mxu0 %v895
    %897 = vmatprep.subr.mxu0 0.0
    %898 = vmatpush2.msra.mxu0 0.0
    %899 = vmatprep.subr.mxu0 0.0
    %900 = vmatpush2.msra.mxu0 0.0
    %901 = vmatprep.subr.mxu0 0.0
    %902 = vmatpush2.msra.mxu0 0.0
    %903 = vmatprep.subr.mxu0 0.0
    %904 = vmatpush2.msra.mxu0 0.0
    %905 = vmatprep.subr.mxu0 0.0
    %906 = vmatpush2.msra.mxu0 0.0
    %907 = vmatprep.subr.mxu0 0.0
    %908 = vmatpush2.msra.mxu0 0.0
    %909 = vmatprep.subr.mxu0 0.0
    %910 = vmatpush2.msra.mxu0 0.0
    %911 = vmatprep.subr.mxu0 0.0
    %912 = vmatpush2.msra.mxu0 0.0
    %913 = vmatprep.subr.mxu0 0.0
    %914 = vmatpush2.msra.mxu0 0.0
    %915 = vmatprep.subr.mxu0 0.0
    %916 = vmatpush2.msra.mxu0 0.0
    %917 = vmatprep.subr.mxu0 0.0
    %918 = vmatpush2.msra.mxu0 0.0
    %919 = vmatprep.subr.mxu0 0.0
    %920 = vmatpush2.msra.mxu0 0.0
    %921 = vmatprep.subr.mxu0 0.0
    %922 = vmatpush2.msra.mxu0 0.0
    %923 = vmatprep.subr.mxu0 0.0
    %924 = vmatpush2.msra.mxu0 0.0
    %925 = vmatprep.subr.mxu0 0.0
    %926 = vmatpush2.msra.mxu0 0.0
    %927 = vmatprep.subr.mxu0 0.0
    %928 = vmatpush2.msra.mxu0 0.0
    %929 = vmatprep.mubr.f32.mxu0 0.0
    %v930 = vand.u32 %v524, 4294901760
    %931 = vmatmul.mubr.f32.gmra.mxu0 %v930
    %v932 = vpop.f32.mrf.mxu0
    %v933 = vadd.f32 %v850, %v932
    %v934 = vpop.f32.mrf.mxu0
    %935 = vdwg.mxu0
    %936 = vmatprep.subr.mxu0 0.0
    %937 = vmatpush1.msra.mxu0 0.0
    %938 = vmatprep.subr.mxu0 0.0
    %939 = vmatpush1.msra.mxu0 0.0
    %940 = vmatprep.subr.mxu0 0.0
    %941 = vmatpush1.msra.mxu0 0.0
    %942 = vmatprep.subr.mxu0 0.0
    %943 = vmatpush1.msra.mxu0 0.0
    %944 = vmatprep.subr.mxu0 0.0
    %945 = vmatpush1.msra.mxu0 0.0
    %946 = vmatprep.subr.mxu0 0.0
    %947 = vmatpush1.msra.mxu0 0.0
    %948 = vmatprep.subr.mxu0 0.0
    %949 = vmatpush1.msra.mxu0 0.0
    %950 = vmatprep.subr.mxu0 0.0
    %951 = vmatpush1.msra.mxu0 0.0
    %952 = vmatprep.subr.mxu0 0.0
    %953 = vmatpush1.msra.mxu0 0.0
    %954 = vmatprep.subr.mxu0 0.0
    %955 = vmatpush1.msra.mxu0 0.0
    %956 = vmatprep.subr.mxu0 0.0
    %957 = vmatpush1.msra.mxu0 0.0
    %958 = vmatprep.subr.mxu0 0.0
    %959 = vmatpush1.msra.mxu0 0.0
    %960 = vmatprep.subr.mxu0 0.0
    %v961 = vand.u32 %v516, 4294901760
    %962 = vmatpush1.msra.mxu0 %v961
    %963 = vmatprep.subr.mxu0 0.0
    %v964 = vand.u32 %v515, 4294901760
    %965 = vmatpush1.msra.mxu0 %v964
    %966 = vmatprep.subr.mxu0 0.0
    %v967 = vand.u32 %v514, 4294901760
    %968 = vmatpush1.msra.mxu0 %v967
    %969 = vmatprep.subr.mxu0 0.0
    %v970 = vand.u32 %v513, 4294901760
    %971 = vmatpush1.msra.mxu0 %v970
    %972 = vmatprep.subr.mxu0 0.0
    %973 = vmatpush2.msra.mxu0 0.0
    %974 = vmatprep.subr.mxu0 0.0
    %975 = vmatpush2.msra.mxu0 0.0
    %976 = vmatprep.subr.mxu0 0.0
    %977 = vmatpush2.msra.mxu0 0.0
    %978 = vmatprep.subr.mxu0 0.0
    %979 = vmatpush2.msra.mxu0 0.0
    %980 = vmatprep.subr.mxu0 0.0
    %981 = vmatpush2.msra.mxu0 0.0
    %982 = vmatprep.subr.mxu0 0.0
    %983 = vmatpush2.msra.mxu0 0.0
    %984 = vmatprep.subr.mxu0 0.0
    %985 = vmatpush2.msra.mxu0 0.0
    %986 = vmatprep.subr.mxu0 0.0
    %987 = vmatpush2.msra.mxu0 0.0
    %988 = vmatprep.subr.mxu0 0.0
    %989 = vmatpush2.msra.mxu0 0.0
    %990 = vmatprep.subr.mxu0 0.0
    %991 = vmatpush2.msra.mxu0 0.0
    %992 = vmatprep.subr.mxu0 0.0
    %993 = vmatpush2.msra.mxu0 0.0
    %994 = vmatprep.subr.mxu0 0.0
    %995 = vmatpush2.msra.mxu0 0.0
    %996 = vmatprep.subr.mxu0 0.0
    %997 = vmatpush2.msra.mxu0 0.0
    %998 = vmatprep.subr.mxu0 0.0
    %999 = vmatpush2.msra.mxu0 0.0
    %1000 = vmatprep.subr.mxu0 0.0
    %1001 = vmatpush2.msra.mxu0 0.0
    %1002 = vmatprep.subr.mxu0 0.0
    %1003 = vmatpush2.msra.mxu0 0.0
    %1004 = vmatprep.mubr.f32.mxu0 0.0
    %v1005 = vand.u32 %v524, 4294901760
    %1006 = vmatmul.mubr.f32.gmra.mxu0 %v1005
    %v1007 = vpop.f32.mrf.mxu0
    %v1008 = vadd.f32 %v933, %v1007
    %v1009 = vpop.f32.mrf.mxu0
    %1010 = vdwg.mxu0
    %v1011 = vmax.f32 %v1008, 0.0
    %v1012 = vld [vmem:[#allocation4 + $0x40] sm:$0xff]
    %v1013 = vld [vmem:[#allocation4 + $0x48] sm:$0xff]
    %v1014 = vld [vmem:[#allocation4 + $0x50] sm:$0x1]
    %v1015 = vlaneseq
    %v1016 = vshrl.u32 %v1015, 7
    %v1017 = vsub.s32 0, %v1016
    %v1018 = vrot.slane %v1014, %v1017
    %vm1019 = vcmask 130048
    %v1021 = vsel %vm1019, %v1011, 0
    %1023 = vmatprep.subr.mxu0 0.0
    %1024 = vmatpush1.msra.mxu0 0.0
    %1025 = vmatprep.subr.mxu0 0.0
    %1026 = vmatpush1.msra.mxu0 0.0
    %1027 = vmatprep.subr.mxu0 0.0
    %1028 = vmatpush1.msra.mxu0 0.0
    %1029 = vmatprep.subr.mxu0 0.0
    %1030 = vmatpush1.msra.mxu0 0.0
    %1031 = vmatprep.subr.mxu0 0.0
    %1032 = vmatpush1.msra.mxu0 0.0
    %1033 = vmatprep.subr.mxu0 0.0
    %1034 = vmatpush1.msra.mxu0 0.0
    %1035 = vmatprep.subr.mxu0 0.0
    %1036 = vmatpush1.msra.mxu0 0.0
    %1037 = vmatprep.subr.mxu0 0.0
    %1038 = vmatpush1.msra.mxu0 0.0
    %1039 = vmatprep.subr.mxu0 0.0
    %1040 = vmatpush1.msra.mxu0 0.0
    %1041 = vmatprep.subr.mxu0 0.0
    %1042 = vmatpush1.msra.mxu0 0.0
    %1043 = vmatprep.subr.mxu0 0.0
    %1044 = vmatpush1.msra.mxu0 0.0
    %1045 = vmatprep.subr.mxu0 0.0
    %1046 = vmatpush1.msra.mxu0 0.0
    %1047 = vmatprep.subr.mxu0 0.0
    %1048 = vmatpush1.msra.mxu0 0.0
    %1049 = vmatprep.subr.mxu0 0.0
    %1050 = vmatpush1.msra.mxu0 0.0
    %1051 = vmatprep.subr.mxu0 0.0
    %v1052 = vand.u32 %v1013, 4294901760
    %1053 = vmatpush1.msra.mxu0 %v1052
    %1054 = vmatprep.subr.mxu0 0.0
    %v1055 = vand.u32 %v1012, 4294901760
    %1056 = vmatpush1.msra.mxu0 %v1055
    %1057 = vmatprep.subr.mxu0 0.0
    %1058 = vmatpush2.msra.mxu0 0.0
    %1059 = vmatprep.subr.mxu0 0.0
    %1060 = vmatpush2.msra.mxu0 0.0
    %1061 = vmatprep.subr.mxu0 0.0
    %1062 = vmatpush2.msra.mxu0 0.0
    %1063 = vmatprep.subr.mxu0 0.0
    %1064 = vmatpush2.msra.mxu0 0.0
    %1065 = vmatprep.subr.mxu0 0.0
    %1066 = vmatpush2.msra.mxu0 0.0
    %1067 = vmatprep.subr.mxu0 0.0
    %1068 = vmatpush2.msra.mxu0 0.0
    %1069 = vmatprep.subr.mxu0 0.0
    %1070 = vmatpush2.msra.mxu0 0.0
    %1071 = vmatprep.subr.mxu0 0.0
    %1072 = vmatpush2.msra.mxu0 0.0
    %1073 = vmatprep.subr.mxu0 0.0
    %1074 = vmatpush2.msra.mxu0 0.0
    %1075 = vmatprep.subr.mxu0 0.0
    %1076 = vmatpush2.msra.mxu0 0.0
    %1077 = vmatprep.subr.mxu0 0.0
    %1078 = vmatpush2.msra.mxu0 0.0
    %1079 = vmatprep.subr.mxu0 0.0
    %1080 = vmatpush2.msra.mxu0 0.0
    %1081 = vmatprep.subr.mxu0 0.0
    %1082 = vmatpush2.msra.mxu0 0.0
    %1083 = vmatprep.subr.mxu0 0.0
    %1084 = vmatpush2.msra.mxu0 0.0
    %1085 = vmatprep.subr.mxu0 0.0
    %1086 = vmatpush2.msra.mxu0 0.0
    %1087 = vmatprep.subr.mxu0 0.0
    %1088 = vmatpush2.msra.mxu0 0.0
    %1089 = vmatprep.mubr.f32.mxu0 0.0
    %v1090 = vand.u32 %v1021, 4294901760
    %v1091 = vsub.f32 %v1021, %v1090
    %v1092 = vand.u32 %v1091, 4294901760
    %v1093 = vsub.f32 %v1091, %v1092
    %v1094 = vand.u32 %v1093, 4294901760
    %1095 = vmatmul.mubr.f32.gmra.mxu0 %v1094
    %v1096 = vpop.f32.mrf.mxu0
    %v1097 = vadd.f32 %v1018, %v1096
    %v1098 = vpop.f32.mrf.mxu0
    %1099 = vdwg.mxu0
    %1100 = vmatprep.subr.mxu0 0.0
    %1101 = vmatpush1.msra.mxu0 0.0
    %1102 = vmatprep.subr.mxu0 0.0
    %1103 = vmatpush1.msra.mxu0 0.0
    %1104 = vmatprep.subr.mxu0 0.0
    %1105 = vmatpush1.msra.mxu0 0.0
    %1106 = vmatprep.subr.mxu0 0.0
    %1107 = vmatpush1.msra.mxu0 0.0
    %1108 = vmatprep.subr.mxu0 0.0
    %1109 = vmatpush1.msra.mxu0 0.0
    %1110 = vmatprep.subr.mxu0 0.0
    %1111 = vmatpush1.msra.mxu0 0.0
    %1112 = vmatprep.subr.mxu0 0.0
    %1113 = vmatpush1.msra.mxu0 0.0
    %1114 = vmatprep.subr.mxu0 0.0
    %1115 = vmatpush1.msra.mxu0 0.0
    %1116 = vmatprep.subr.mxu0 0.0
    %1117 = vmatpush1.msra.mxu0 0.0
    %1118 = vmatprep.subr.mxu0 0.0
    %1119 = vmatpush1.msra.mxu0 0.0
    %1120 = vmatprep.subr.mxu0 0.0
    %1121 = vmatpush1.msra.mxu0 0.0
    %1122 = vmatprep.subr.mxu0 0.0
    %1123 = vmatpush1.msra.mxu0 0.0
    %1124 = vmatprep.subr.mxu0 0.0
    %1125 = vmatpush1.msra.mxu0 0.0
    %1126 = vmatprep.subr.mxu0 0.0
    %1127 = vmatpush1.msra.mxu0 0.0
    %1128 = vmatprep.subr.mxu0 0.0
    %v1129 = vand.u32 %v1013, 4294901760
    %v1130 = vsub.f32 %v1013, %v1129
    %v1131 = vand.u32 %v1130, 4294901760
    %v1132 = vsub.f32 %v1130, %v1131
    %v1133 = vand.u32 %v1132, 4294901760
    %1134 = vmatpush1.msra.mxu0 %v1133
    %1135 = vmatprep.subr.mxu0 0.0
    %v1136 = vand.u32 %v1012, 4294901760
    %v1137 = vsub.f32 %v1012, %v1136
    %v1138 = vand.u32 %v1137, 4294901760
    %v1139 = vsub.f32 %v1137, %v1138
    %v1140 = vand.u32 %v1139, 4294901760
    %1141 = vmatpush1.msra.mxu0 %v1140
    %1142 = vmatprep.subr.mxu0 0.0
    %1143 = vmatpush2.msra.mxu0 0.0
    %1144 = vmatprep.subr.mxu0 0.0
    %1145 = vmatpush2.msra.mxu0 0.0
    %1146 = vmatprep.subr.mxu0 0.0
    %1147 = vmatpush2.msra.mxu0 0.0
    %1148 = vmatprep.subr.mxu0 0.0
    %1149 = vmatpush2.msra.mxu0 0.0
    %1150 = vmatprep.subr.mxu0 0.0
    %1151 = vmatpush2.msra.mxu0 0.0
    %1152 = vmatprep.subr.mxu0 0.0
    %1153 = vmatpush2.msra.mxu0 0.0
    %1154 = vmatprep.subr.mxu0 0.0
    %1155 = vmatpush2.msra.mxu0 0.0
    %1156 = vmatprep.subr.mxu0 0.0
    %1157 = vmatpush2.msra.mxu0 0.0
    %1158 = vmatprep.subr.mxu0 0.0
    %1159 = vmatpush2.msra.mxu0 0.0
    %1160 = vmatprep.subr.mxu0 0.0
    %1161 = vmatpush2.msra.mxu0 0.0
    %1162 = vmatprep.subr.mxu0 0.0
    %1163 = vmatpush2.msra.mxu0 0.0
    %1164 = vmatprep.subr.mxu0 0.0
    %1165 = vmatpush2.msra.mxu0 0.0
    %1166 = vmatprep.subr.mxu0 0.0
    %1167 = vmatpush2.msra.mxu0 0.0
    %1168 = vmatprep.subr.mxu0 0.0
    %1169 = vmatpush2.msra.mxu0 0.0
    %1170 = vmatprep.subr.mxu0 0.0
    %1171 = vmatpush2.msra.mxu0 0.0
    %1172 = vmatprep.subr.mxu0 0.0
    %1173 = vmatpush2.msra.mxu0 0.0
    %1174 = vmatprep.mubr.f32.mxu0 0.0
    %v1175 = vand.u32 %v1021, 4294901760
    %1176 = vmatmul.mubr.f32.gmra.mxu0 %v1175
    %v1177 = vpop.f32.mrf.mxu0
    %v1178 = vadd.f32 %v1097, %v1177
    %v1179 = vpop.f32.mrf.mxu0
    %1180 = vdwg.mxu0
    %1181 = vmatprep.subr.mxu0 0.0
    %1182 = vmatpush1.msra.mxu0 0.0
    %1183 = vmatprep.subr.mxu0 0.0
    %1184 = vmatpush1.msra.mxu0 0.0
    %1185 = vmatprep.subr.mxu0 0.0
    %1186 = vmatpush1.msra.mxu0 0.0
    %1187 = vmatprep.subr.mxu0 0.0
    %1188 = vmatpush1.msra.mxu0 0.0
    %1189 = vmatprep.subr.mxu0 0.0
    %1190 = vmatpush1.msra.mxu0 0.0
    %1191 = vmatprep.subr.mxu0 0.0
    %1192 = vmatpush1.msra.mxu0 0.0
    %1193 = vmatprep.subr.mxu0 0.0
    %1194 = vmatpush1.msra.mxu0 0.0
    %1195 = vmatprep.subr.mxu0 0.0
    %1196 = vmatpush1.msra.mxu0 0.0
    %1197 = vmatprep.subr.mxu0 0.0
    %1198 = vmatpush1.msra.mxu0 0.0
    %1199 = vmatprep.subr.mxu0 0.0
    %1200 = vmatpush1.msra.mxu0 0.0
    %1201 = vmatprep.subr.mxu0 0.0
    %1202 = vmatpush1.msra.mxu0 0.0
    %1203 = vmatprep.subr.mxu0 0.0
    %1204 = vmatpush1.msra.mxu0 0.0
    %1205 = vmatprep.subr.mxu0 0.0
    %1206 = vmatpush1.msra.mxu0 0.0
    %1207 = vmatprep.subr.mxu0 0.0
    %1208 = vmatpush1.msra.mxu0 0.0
    %1209 = vmatprep.subr.mxu0 0.0
    %v1210 = vand.u32 %v1013, 4294901760
    %v1211 = vsub.f32 %v1013, %v1210
    %1212 = vmatpush1.msra.mxu0 %v1211
    %1213 = vmatprep.subr.mxu0 0.0
    %v1214 = vand.u32 %v1012, 4294901760
    %v1215 = vsub.f32 %v1012, %v1214
    %1216 = vmatpush1.msra.mxu0 %v1215
    %1217 = vmatprep.subr.mxu0 0.0
    %1218 = vmatpush2.msra.mxu0 0.0
    %1219 = vmatprep.subr.mxu0 0.0
    %1220 = vmatpush2.msra.mxu0 0.0
    %1221 = vmatprep.subr.mxu0 0.0
    %1222 = vmatpush2.msra.mxu0 0.0
    %1223 = vmatprep.subr.mxu0 0.0
    %1224 = vmatpush2.msra.mxu0 0.0
    %1225 = vmatprep.subr.mxu0 0.0
    %1226 = vmatpush2.msra.mxu0 0.0
    %1227 = vmatprep.subr.mxu0 0.0
    %1228 = vmatpush2.msra.mxu0 0.0
    %1229 = vmatprep.subr.mxu0 0.0
    %1230 = vmatpush2.msra.mxu0 0.0
    %1231 = vmatprep.subr.mxu0 0.0
    %1232 = vmatpush2.msra.mxu0 0.0
    %1233 = vmatprep.subr.mxu0 0.0
    %1234 = vmatpush2.msra.mxu0 0.0
    %1235 = vmatprep.subr.mxu0 0.0
    %1236 = vmatpush2.msra.mxu0 0.0
    %1237 = vmatprep.subr.mxu0 0.0
    %1238 = vmatpush2.msra.mxu0 0.0
    %1239 = vmatprep.subr.mxu0 0.0
    %1240 = vmatpush2.msra.mxu0 0.0
    %1241 = vmatprep.subr.mxu0 0.0
    %1242 = vmatpush2.msra.mxu0 0.0
    %1243 = vmatprep.subr.mxu0 0.0
    %1244 = vmatpush2.msra.mxu0 0.0
    %1245 = vmatprep.subr.mxu0 0.0
    %1246 = vmatpush2.msra.mxu0 0.0
    %1247 = vmatprep.subr.mxu0 0.0
    %1248 = vmatpush2.msra.mxu0 0.0
    %1249 = vmatprep.mubr.f32.mxu0 0.0
    %v1250 = vand.u32 %v1021, 4294901760
    %v1251 = vsub.f32 %v1021, %v1250
    %1252 = vmatmul.mubr.f32.gmra.mxu0 %v1251
    %v1253 = vpop.f32.mrf.mxu0
    %v1254 = vadd.f32 %v1178, %v1253
    %v1255 = vpop.f32.mrf.mxu0
    %1256 = vdwg.mxu0
    %1257 = vmatprep.subr.mxu0 0.0
    %1258 = vmatpush1.msra.mxu0 0.0
    %1259 = vmatprep.subr.mxu0 0.0
    %1260 = vmatpush1.msra.mxu0 0.0
    %1261 = vmatprep.subr.mxu0 0.0
    %1262 = vmatpush1.msra.mxu0 0.0
    %1263 = vmatprep.subr.mxu0 0.0
    %1264 = vmatpush1.msra.mxu0 0.0
    %1265 = vmatprep.subr.mxu0 0.0
    %1266 = vmatpush1.msra.mxu0 0.0
    %1267 = vmatprep.subr.mxu0 0.0
    %1268 = vmatpush1.msra.mxu0 0.0
    %1269 = vmatprep.subr.mxu0 0.0
    %1270 = vmatpush1.msra.mxu0 0.0
    %1271 = vmatprep.subr.mxu0 0.0
    %1272 = vmatpush1.msra.mxu0 0.0
    %1273 = vmatprep.subr.mxu0 0.0
    %1274 = vmatpush1.msra.mxu0 0.0
    %1275 = vmatprep.subr.mxu0 0.0
    %1276 = vmatpush1.msra.mxu0 0.0
    %1277 = vmatprep.subr.mxu0 0.0
    %1278 = vmatpush1.msra.mxu0 0.0
    %1279 = vmatprep.subr.mxu0 0.0
    %1280 = vmatpush1.msra.mxu0 0.0
    %1281 = vmatprep.subr.mxu0 0.0
    %1282 = vmatpush1.msra.mxu0 0.0
    %1283 = vmatprep.subr.mxu0 0.0
    %1284 = vmatpush1.msra.mxu0 0.0
    %1285 = vmatprep.subr.mxu0 0.0
    %v1286 = vand.u32 %v1013, 4294901760
    %1287 = vmatpush1.msra.mxu0 %v1286
    %1288 = vmatprep.subr.mxu0 0.0
    %v1289 = vand.u32 %v1012, 4294901760
    %1290 = vmatpush1.msra.mxu0 %v1289
    %1291 = vmatprep.subr.mxu0 0.0
    %1292 = vmatpush2.msra.mxu0 0.0
    %1293 = vmatprep.subr.mxu0 0.0
    %1294 = vmatpush2.msra.mxu0 0.0
    %1295 = vmatprep.subr.mxu0 0.0
    %1296 = vmatpush2.msra.mxu0 0.0
    %1297 = vmatprep.subr.mxu0 0.0
    %1298 = vmatpush2.msra.mxu0 0.0
    %1299 = vmatprep.subr.mxu0 0.0
    %1300 = vmatpush2.msra.mxu0 0.0
    %1301 = vmatprep.subr.mxu0 0.0
    %1302 = vmatpush2.msra.mxu0 0.0
    %1303 = vmatprep.subr.mxu0 0.0
    %1304 = vmatpush2.msra.mxu0 0.0
    %1305 = vmatprep.subr.mxu0 0.0
    %1306 = vmatpush2.msra.mxu0 0.0
    %1307 = vmatprep.subr.mxu0 0.0
    %1308 = vmatpush2.msra.mxu0 0.0
    %1309 = vmatprep.subr.mxu0 0.0
    %1310 = vmatpush2.msra.mxu0 0.0
    %1311 = vmatprep.subr.mxu0 0.0
    %1312 = vmatpush2.msra.mxu0 0.0
    %1313 = vmatprep.subr.mxu0 0.0
    %1314 = vmatpush2.msra.mxu0 0.0
    %1315 = vmatprep.subr.mxu0 0.0
    %1316 = vmatpush2.msra.mxu0 0.0
    %1317 = vmatprep.subr.mxu0 0.0
    %1318 = vmatpush2.msra.mxu0 0.0
    %1319 = vmatprep.subr.mxu0 0.0
    %1320 = vmatpush2.msra.mxu0 0.0
    %1321 = vmatprep.subr.mxu0 0.0
    %1322 = vmatpush2.msra.mxu0 0.0
    %1323 = vmatprep.mubr.f32.mxu0 0.0
    %v1324 = vand.u32 %v1021, 4294901760
    %v1325 = vsub.f32 %v1021, %v1324
    %v1326 = vand.u32 %v1325, 4294901760
    %1327 = vmatmul.mubr.f32.gmra.mxu0 %v1326
    %v1328 = vpop.f32.mrf.mxu0
    %v1329 = vadd.f32 %v1254, %v1328
    %v1330 = vpop.f32.mrf.mxu0
    %1331 = vdwg.mxu0
    %1332 = vmatprep.subr.mxu0 0.0
    %1333 = vmatpush1.msra.mxu0 0.0
    %1334 = vmatprep.subr.mxu0 0.0
    %1335 = vmatpush1.msra.mxu0 0.0
    %1336 = vmatprep.subr.mxu0 0.0
    %1337 = vmatpush1.msra.mxu0 0.0
    %1338 = vmatprep.subr.mxu0 0.0
    %1339 = vmatpush1.msra.mxu0 0.0
    %1340 = vmatprep.subr.mxu0 0.0
    %1341 = vmatpush1.msra.mxu0 0.0
    %1342 = vmatprep.subr.mxu0 0.0
    %1343 = vmatpush1.msra.mxu0 0.0
    %1344 = vmatprep.subr.mxu0 0.0
    %1345 = vmatpush1.msra.mxu0 0.0
    %1346 = vmatprep.subr.mxu0 0.0
    %1347 = vmatpush1.msra.mxu0 0.0
    %1348 = vmatprep.subr.mxu0 0.0
    %1349 = vmatpush1.msra.mxu0 0.0
    %1350 = vmatprep.subr.mxu0 0.0
    %1351 = vmatpush1.msra.mxu0 0.0
    %1352 = vmatprep.subr.mxu0 0.0
    %1353 = vmatpush1.msra.mxu0 0.0
    %1354 = vmatprep.subr.mxu0 0.0
    %1355 = vmatpush1.msra.mxu0 0.0
    %1356 = vmatprep.subr.mxu0 0.0
    %1357 = vmatpush1.msra.mxu0 0.0
    %1358 = vmatprep.subr.mxu0 0.0
    %1359 = vmatpush1.msra.mxu0 0.0
    %1360 = vmatprep.subr.mxu0 0.0
    %v1361 = vand.u32 %v1013, 4294901760
    %v1362 = vsub.f32 %v1013, %v1361
    %v1363 = vand.u32 %v1362, 4294901760
    %1364 = vmatpush1.msra.mxu0 %v1363
    %1365 = vmatprep.subr.mxu0 0.0
    %v1366 = vand.u32 %v1012, 4294901760
    %v1367 = vsub.f32 %v1012, %v1366
    %v1368 = vand.u32 %v1367, 4294901760
    %1369 = vmatpush1.msra.mxu0 %v1368
    %1370 = vmatprep.subr.mxu0 0.0
    %1371 = vmatpush2.msra.mxu0 0.0
    %1372 = vmatprep.subr.mxu0 0.0
    %1373 = vmatpush2.msra.mxu0 0.0
    %1374 = vmatprep.subr.mxu0 0.0
    %1375 = vmatpush2.msra.mxu0 0.0
    %1376 = vmatprep.subr.mxu0 0.0
    %1377 = vmatpush2.msra.mxu0 0.0
    %1378 = vmatprep.subr.mxu0 0.0
    %1379 = vmatpush2.msra.mxu0 0.0
    %1380 = vmatprep.subr.mxu0 0.0
    %1381 = vmatpush2.msra.mxu0 0.0
    %1382 = vmatprep.subr.mxu0 0.0
    %1383 = vmatpush2.msra.mxu0 0.0
    %1384 = vmatprep.subr.mxu0 0.0
    %1385 = vmatpush2.msra.mxu0 0.0
    %1386 = vmatprep.subr.mxu0 0.0
    %1387 = vmatpush2.msra.mxu0 0.0
    %1388 = vmatprep.subr.mxu0 0.0
    %1389 = vmatpush2.msra.mxu0 0.0
    %1390 = vmatprep.subr.mxu0 0.0
    %1391 = vmatpush2.msra.mxu0 0.0
    %1392 = vmatprep.subr.mxu0 0.0
    %1393 = vmatpush2.msra.mxu0 0.0
    %1394 = vmatprep.subr.mxu0 0.0
    %1395 = vmatpush2.msra.mxu0 0.0
    %1396 = vmatprep.subr.mxu0 0.0
    %1397 = vmatpush2.msra.mxu0 0.0
    %1398 = vmatprep.subr.mxu0 0.0
    %1399 = vmatpush2.msra.mxu0 0.0
    %1400 = vmatprep.subr.mxu0 0.0
    %1401 = vmatpush2.msra.mxu0 0.0
    %1402 = vmatprep.mubr.f32.mxu0 0.0
    %v1403 = vand.u32 %v1021, 4294901760
    %1404 = vmatmul.mubr.f32.gmra.mxu0 %v1403
    %v1405 = vpop.f32.mrf.mxu0
    %v1406 = vadd.f32 %v1329, %v1405
    %v1407 = vpop.f32.mrf.mxu0
    %1408 = vdwg.mxu0
    %1409 = vmatprep.subr.mxu0 0.0
    %1410 = vmatpush1.msra.mxu0 0.0
    %1411 = vmatprep.subr.mxu0 0.0
    %1412 = vmatpush1.msra.mxu0 0.0
    %1413 = vmatprep.subr.mxu0 0.0
    %1414 = vmatpush1.msra.mxu0 0.0
    %1415 = vmatprep.subr.mxu0 0.0
    %1416 = vmatpush1.msra.mxu0 0.0
    %1417 = vmatprep.subr.mxu0 0.0
    %1418 = vmatpush1.msra.mxu0 0.0
    %1419 = vmatprep.subr.mxu0 0.0
    %1420 = vmatpush1.msra.mxu0 0.0
    %1421 = vmatprep.subr.mxu0 0.0
    %1422 = vmatpush1.msra.mxu0 0.0
    %1423 = vmatprep.subr.mxu0 0.0
    %1424 = vmatpush1.msra.mxu0 0.0
    %1425 = vmatprep.subr.mxu0 0.0
    %1426 = vmatpush1.msra.mxu0 0.0
    %1427 = vmatprep.subr.mxu0 0.0
    %1428 = vmatpush1.msra.mxu0 0.0
    %1429 = vmatprep.subr.mxu0 0.0
    %1430 = vmatpush1.msra.mxu0 0.0
    %1431 = vmatprep.subr.mxu0 0.0
    %1432 = vmatpush1.msra.mxu0 0.0
    %1433 = vmatprep.subr.mxu0 0.0
    %1434 = vmatpush1.msra.mxu0 0.0
    %1435 = vmatprep.subr.mxu0 0.0
    %1436 = vmatpush1.msra.mxu0 0.0
    %1437 = vmatprep.subr.mxu0 0.0
    %v1438 = vand.u32 %v1013, 4294901760
    %1439 = vmatpush1.msra.mxu0 %v1438
    %1440 = vmatprep.subr.mxu0 0.0
    %v1441 = vand.u32 %v1012, 4294901760
    %1442 = vmatpush1.msra.mxu0 %v1441
    %1443 = vmatprep.subr.mxu0 0.0
    %1444 = vmatpush2.msra.mxu0 0.0
    %1445 = vmatprep.subr.mxu0 0.0
    %1446 = vmatpush2.msra.mxu0 0.0
    %1447 = vmatprep.subr.mxu0 0.0
    %1448 = vmatpush2.msra.mxu0 0.0
    %1449 = vmatprep.subr.mxu0 0.0
    %1450 = vmatpush2.msra.mxu0 0.0
    %1451 = vmatprep.subr.mxu0 0.0
    %1452 = vmatpush2.msra.mxu0 0.0
    %1453 = vmatprep.subr.mxu0 0.0
    %1454 = vmatpush2.msra.mxu0 0.0
    %1455 = vmatprep.subr.mxu0 0.0
    %1456 = vmatpush2.msra.mxu0 0.0
    %1457 = vmatprep.subr.mxu0 0.0
    %1458 = vmatpush2.msra.mxu0 0.0
    %1459 = vmatprep.subr.mxu0 0.0
    %1460 = vmatpush2.msra.mxu0 0.0
    %1461 = vmatprep.subr.mxu0 0.0
    %1462 = vmatpush2.msra.mxu0 0.0
    %1463 = vmatprep.subr.mxu0 0.0
    %1464 = vmatpush2.msra.mxu0 0.0
    %1465 = vmatprep.subr.mxu0 0.0
    %1466 = vmatpush2.msra.mxu0 0.0
    %1467 = vmatprep.subr.mxu0 0.0
    %1468 = vmatpush2.msra.mxu0 0.0
    %1469 = vmatprep.subr.mxu0 0.0
    %1470 = vmatpush2.msra.mxu0 0.0
    %1471 = vmatprep.subr.mxu0 0.0
    %1472 = vmatpush2.msra.mxu0 0.0
    %1473 = vmatprep.subr.mxu0 0.0
    %1474 = vmatpush2.msra.mxu0 0.0
    %1475 = vmatprep.mubr.f32.mxu0 0.0
    %v1476 = vand.u32 %v1021, 4294901760
    %1477 = vmatmul.mubr.f32.gmra.mxu0 %v1476
    %v1478 = vpop.f32.mrf.mxu0
    %v1479 = vadd.f32 %v1406, %v1478
    %v1480 = vpop.f32.mrf.mxu0
    %1481 = vdwg.mxu0
    %v1482 = vmax.f32 %v1479, 0.0
    %v1483 = vld [vmem:[#allocation4 + $0x58] sm:$0xff]
    %v1484 = vld [vmem:[#allocation4 + $0x60] sm:$0x1]
    %v1485 = vlaneseq
    %v1486 = vshrl.u32 %v1485, 7
    %v1487 = vsub.s32 0, %v1486
    %v1488 = vrot.slane %v1484, %v1487
    %vm1489 = vcmask 64512
    %v1491 = vsel %vm1489, %v1482, 0
    %1493 = vmatprep.subr.mxu0 0.0
    %1494 = vmatpush1.msra.mxu0 0.0
    %1495 = vmatprep.subr.mxu0 0.0
    %1496 = vmatpush1.msra.mxu0 0.0
    %1497 = vmatprep.subr.mxu0 0.0
    %1498 = vmatpush1.msra.mxu0 0.0
    %1499 = vmatprep.subr.mxu0 0.0
    %1500 = vmatpush1.msra.mxu0 0.0
    %1501 = vmatprep.subr.mxu0 0.0
    %1502 = vmatpush1.msra.mxu0 0.0
    %1503 = vmatprep.subr.mxu0 0.0
    %1504 = vmatpush1.msra.mxu0 0.0
    %1505 = vmatprep.subr.mxu0 0.0
    %1506 = vmatpush1.msra.mxu0 0.0
    %1507 = vmatprep.subr.mxu0 0.0
    %1508 = vmatpush1.msra.mxu0 0.0
    %1509 = vmatprep.subr.mxu0 0.0
    %1510 = vmatpush1.msra.mxu0 0.0
    %1511 = vmatprep.subr.mxu0 0.0
    %1512 = vmatpush1.msra.mxu0 0.0
    %1513 = vmatprep.subr.mxu0 0.0
    %1514 = vmatpush1.msra.mxu0 0.0
    %1515 = vmatprep.subr.mxu0 0.0
    %1516 = vmatpush1.msra.mxu0 0.0
    %1517 = vmatprep.subr.mxu0 0.0
    %1518 = vmatpush1.msra.mxu0 0.0
    %1519 = vmatprep.subr.mxu0 0.0
    %1520 = vmatpush1.msra.mxu0 0.0
    %1521 = vmatprep.subr.mxu0 0.0
    %1522 = vmatpush1.msra.mxu0 0.0
    %1523 = vmatprep.subr.mxu0 0.0
    %v1524 = vand.u32 %v1483, 4294901760
    %1525 = vmatpush1.msra.mxu0 %v1524
    %1526 = vmatprep.subr.mxu0 0.0
    %1527 = vmatpush2.msra.mxu0 0.0
    %1528 = vmatprep.subr.mxu0 0.0
    %1529 = vmatpush2.msra.mxu0 0.0
    %1530 = vmatprep.subr.mxu0 0.0
    %1531 = vmatpush2.msra.mxu0 0.0
    %1532 = vmatprep.subr.mxu0 0.0
    %1533 = vmatpush2.msra.mxu0 0.0
    %1534 = vmatprep.subr.mxu0 0.0
    %1535 = vmatpush2.msra.mxu0 0.0
    %1536 = vmatprep.subr.mxu0 0.0
    %1537 = vmatpush2.msra.mxu0 0.0
    %1538 = vmatprep.subr.mxu0 0.0
    %1539 = vmatpush2.msra.mxu0 0.0
    %1540 = vmatprep.subr.mxu0 0.0
    %1541 = vmatpush2.msra.mxu0 0.0
    %1542 = vmatprep.subr.mxu0 0.0
    %1543 = vmatpush2.msra.mxu0 0.0
    %1544 = vmatprep.subr.mxu0 0.0
    %1545 = vmatpush2.msra.mxu0 0.0
    %1546 = vmatprep.subr.mxu0 0.0
    %1547 = vmatpush2.msra.mxu0 0.0
    %1548 = vmatprep.subr.mxu0 0.0
    %1549 = vmatpush2.msra.mxu0 0.0
    %1550 = vmatprep.subr.mxu0 0.0
    %1551 = vmatpush2.msra.mxu0 0.0
    %1552 = vmatprep.subr.mxu0 0.0
    %1553 = vmatpush2.msra.mxu0 0.0
    %1554 = vmatprep.subr.mxu0 0.0
    %1555 = vmatpush2.msra.mxu0 0.0
    %1556 = vmatprep.subr.mxu0 0.0
    %1557 = vmatpush2.msra.mxu0 0.0
    %1558 = vmatprep.mubr.f32.mxu0 0.0
    %v1559 = vand.u32 %v1491, 4294901760
    %v1560 = vsub.f32 %v1491, %v1559
    %v1561 = vand.u32 %v1560, 4294901760
    %v1562 = vsub.f32 %v1560, %v1561
    %v1563 = vand.u32 %v1562, 4294901760
    %1564 = vmatmul.mubr.f32.gmra.mxu0 %v1563
    %v1565 = vpop.f32.mrf.mxu0
    %v1566 = vadd.f32 %v1488, %v1565
    %v1567 = vpop.f32.mrf.mxu0
    %1568 = vdwg.mxu0
    %1569 = vmatprep.subr.mxu0 0.0
    %1570 = vmatpush1.msra.mxu0 0.0
    %1571 = vmatprep.subr.mxu0 0.0
    %1572 = vmatpush1.msra.mxu0 0.0
    %1573 = vmatprep.subr.mxu0 0.0
    %1574 = vmatpush1.msra.mxu0 0.0
    %1575 = vmatprep.subr.mxu0 0.0
    %1576 = vmatpush1.msra.mxu0 0.0
    %1577 = vmatprep.subr.mxu0 0.0
    %1578 = vmatpush1.msra.mxu0 0.0
    %1579 = vmatprep.subr.mxu0 0.0
    %1580 = vmatpush1.msra.mxu0 0.0
    %1581 = vmatprep.subr.mxu0 0.0
    %1582 = vmatpush1.msra.mxu0 0.0
    %1583 = vmatprep.subr.mxu0 0.0
    %1584 = vmatpush1.msra.mxu0 0.0
    %1585 = vmatprep.subr.mxu0 0.0
    %1586 = vmatpush1.msra.mxu0 0.0
    %1587 = vmatprep.subr.mxu0 0.0
    %1588 = vmatpush1.msra.mxu0 0.0
    %1589 = vmatprep.subr.mxu0 0.0
    %1590 = vmatpush1.msra.mxu0 0.0
    %1591 = vmatprep.subr.mxu0 0.0
    %1592 = vmatpush1.msra.mxu0 0.0
    %1593 = vmatprep.subr.mxu0 0.0
    %1594 = vmatpush1.msra.mxu0 0.0
    %1595 = vmatprep.subr.mxu0 0.0
    %1596 = vmatpush1.msra.mxu0 0.0
    %1597 = vmatprep.subr.mxu0 0.0
    %1598 = vmatpush1.msra.mxu0 0.0
    %1599 = vmatprep.subr.mxu0 0.0
    %v1600 = vand.u32 %v1483, 4294901760
    %v1601 = vsub.f32 %v1483, %v1600
    %v1602 = vand.u32 %v1601, 4294901760
    %v1603 = vsub.f32 %v1601, %v1602
    %v1604 = vand.u32 %v1603, 4294901760
    %1605 = vmatpush1.msra.mxu0 %v1604
    %1606 = vmatprep.subr.mxu0 0.0
    %1607 = vmatpush2.msra.mxu0 0.0
    %1608 = vmatprep.subr.mxu0 0.0
    %1609 = vmatpush2.msra.mxu0 0.0
    %1610 = vmatprep.subr.mxu0 0.0
    %1611 = vmatpush2.msra.mxu0 0.0
    %1612 = vmatprep.subr.mxu0 0.0
    %1613 = vmatpush2.msra.mxu0 0.0
    %1614 = vmatprep.subr.mxu0 0.0
    %1615 = vmatpush2.msra.mxu0 0.0
    %1616 = vmatprep.subr.mxu0 0.0
    %1617 = vmatpush2.msra.mxu0 0.0
    %1618 = vmatprep.subr.mxu0 0.0
    %1619 = vmatpush2.msra.mxu0 0.0
    %1620 = vmatprep.subr.mxu0 0.0
    %1621 = vmatpush2.msra.mxu0 0.0
    %1622 = vmatprep.subr.mxu0 0.0
    %1623 = vmatpush2.msra.mxu0 0.0
    %1624 = vmatprep.subr.mxu0 0.0
    %1625 = vmatpush2.msra.mxu0 0.0
    %1626 = vmatprep.subr.mxu0 0.0
    %1627 = vmatpush2.msra.mxu0 0.0
    %1628 = vmatprep.subr.mxu0 0.0
    %1629 = vmatpush2.msra.mxu0 0.0
    %1630 = vmatprep.subr.mxu0 0.0
    %1631 = vmatpush2.msra.mxu0 0.0
    %1632 = vmatprep.subr.mxu0 0.0
    %1633 = vmatpush2.msra.mxu0 0.0
    %1634 = vmatprep.subr.mxu0 0.0
    %1635 = vmatpush2.msra.mxu0 0.0
    %1636 = vmatprep.subr.mxu0 0.0
    %1637 = vmatpush2.msra.mxu0 0.0
    %1638 = vmatprep.mubr.f32.mxu0 0.0
    %v1639 = vand.u32 %v1491, 4294901760
    %1640 = vmatmul.mubr.f32.gmra.mxu0 %v1639
    %v1641 = vpop.f32.mrf.mxu0
    %v1642 = vadd.f32 %v1566, %v1641
    %v1643 = vpop.f32.mrf.mxu0
    %1644 = vdwg.mxu0
    %1645 = vmatprep.subr.mxu0 0.0
    %1646 = vmatpush1.msra.mxu0 0.0
    %1647 = vmatprep.subr.mxu0 0.0
    %1648 = vmatpush1.msra.mxu0 0.0
    %1649 = vmatprep.subr.mxu0 0.0
    %1650 = vmatpush1.msra.mxu0 0.0
    %1651 = vmatprep.subr.mxu0 0.0
    %1652 = vmatpush1.msra.mxu0 0.0
    %1653 = vmatprep.subr.mxu0 0.0
    %1654 = vmatpush1.msra.mxu0 0.0
    %1655 = vmatprep.subr.mxu0 0.0
    %1656 = vmatpush1.msra.mxu0 0.0
    %1657 = vmatprep.subr.mxu0 0.0
    %1658 = vmatpush1.msra.mxu0 0.0
    %1659 = vmatprep.subr.mxu0 0.0
    %1660 = vmatpush1.msra.mxu0 0.0
    %1661 = vmatprep.subr.mxu0 0.0
    %1662 = vmatpush1.msra.mxu0 0.0
    %1663 = vmatprep.subr.mxu0 0.0
    %1664 = vmatpush1.msra.mxu0 0.0
    %1665 = vmatprep.subr.mxu0 0.0
    %1666 = vmatpush1.msra.mxu0 0.0
    %1667 = vmatprep.subr.mxu0 0.0
    %1668 = vmatpush1.msra.mxu0 0.0
    %1669 = vmatprep.subr.mxu0 0.0
    %1670 = vmatpush1.msra.mxu0 0.0
    %1671 = vmatprep.subr.mxu0 0.0
    %1672 = vmatpush1.msra.mxu0 0.0
    %1673 = vmatprep.subr.mxu0 0.0
    %1674 = vmatpush1.msra.mxu0 0.0
    %1675 = vmatprep.subr.mxu0 0.0
    %v1676 = vand.u32 %v1483, 4294901760
    %v1677 = vsub.f32 %v1483, %v1676
    %1678 = vmatpush1.msra.mxu0 %v1677
    %1679 = vmatprep.subr.mxu0 0.0
    %1680 = vmatpush2.msra.mxu0 0.0
    %1681 = vmatprep.subr.mxu0 0.0
    %1682 = vmatpush2.msra.mxu0 0.0
    %1683 = vmatprep.subr.mxu0 0.0
    %1684 = vmatpush2.msra.mxu0 0.0
    %1685 = vmatprep.subr.mxu0 0.0
    %1686 = vmatpush2.msra.mxu0 0.0
    %1687 = vmatprep.subr.mxu0 0.0
    %1688 = vmatpush2.msra.mxu0 0.0
    %1689 = vmatprep.subr.mxu0 0.0
    %1690 = vmatpush2.msra.mxu0 0.0
    %1691 = vmatprep.subr.mxu0 0.0
    %1692 = vmatpush2.msra.mxu0 0.0
    %1693 = vmatprep.subr.mxu0 0.0
    %1694 = vmatpush2.msra.mxu0 0.0
    %1695 = vmatprep.subr.mxu0 0.0
    %1696 = vmatpush2.msra.mxu0 0.0
    %1697 = vmatprep.subr.mxu0 0.0
    %1698 = vmatpush2.msra.mxu0 0.0
    %1699 = vmatprep.subr.mxu0 0.0
    %1700 = vmatpush2.msra.mxu0 0.0
    %1701 = vmatprep.subr.mxu0 0.0
    %1702 = vmatpush2.msra.mxu0 0.0
    %1703 = vmatprep.subr.mxu0 0.0
    %1704 = vmatpush2.msra.mxu0 0.0
    %1705 = vmatprep.subr.mxu0 0.0
    %1706 = vmatpush2.msra.mxu0 0.0
    %1707 = vmatprep.subr.mxu0 0.0
    %1708 = vmatpush2.msra.mxu0 0.0
    %1709 = vmatprep.subr.mxu0 0.0
    %1710 = vmatpush2.msra.mxu0 0.0
    %1711 = vmatprep.mubr.f32.mxu0 0.0
    %v1712 = vand.u32 %v1491, 4294901760
    %v1713 = vsub.f32 %v1491, %v1712
    %1714 = vmatmul.mubr.f32.gmra.mxu0 %v1713
    %v1715 = vpop.f32.mrf.mxu0
    %v1716 = vadd.f32 %v1642, %v1715
    %v1717 = vpop.f32.mrf.mxu0
    %1718 = vdwg.mxu0
    %1719 = vmatprep.subr.mxu0 0.0
    %1720 = vmatpush1.msra.mxu0 0.0
    %1721 = vmatprep.subr.mxu0 0.0
    %1722 = vmatpush1.msra.mxu0 0.0
    %1723 = vmatprep.subr.mxu0 0.0
    %1724 = vmatpush1.msra.mxu0 0.0
    %1725 = vmatprep.subr.mxu0 0.0
    %1726 = vmatpush1.msra.mxu0 0.0
    %1727 = vmatprep.subr.mxu0 0.0
    %1728 = vmatpush1.msra.mxu0 0.0
    %1729 = vmatprep.subr.mxu0 0.0
    %1730 = vmatpush1.msra.mxu0 0.0
    %1731 = vmatprep.subr.mxu0 0.0
    %1732 = vmatpush1.msra.mxu0 0.0
    %1733 = vmatprep.subr.mxu0 0.0
    %1734 = vmatpush1.msra.mxu0 0.0
    %1735 = vmatprep.subr.mxu0 0.0
    %1736 = vmatpush1.msra.mxu0 0.0
    %1737 = vmatprep.subr.mxu0 0.0
    %1738 = vmatpush1.msra.mxu0 0.0
    %1739 = vmatprep.subr.mxu0 0.0
    %1740 = vmatpush1.msra.mxu0 0.0
    %1741 = vmatprep.subr.mxu0 0.0
    %1742 = vmatpush1.msra.mxu0 0.0
    %1743 = vmatprep.subr.mxu0 0.0
    %1744 = vmatpush1.msra.mxu0 0.0
    %1745 = vmatprep.subr.mxu0 0.0
    %1746 = vmatpush1.msra.mxu0 0.0
    %1747 = vmatprep.subr.mxu0 0.0
    %1748 = vmatpush1.msra.mxu0 0.0
    %1749 = vmatprep.subr.mxu0 0.0
    %v1750 = vand.u32 %v1483, 4294901760
    %1751 = vmatpush1.msra.mxu0 %v1750
    %1752 = vmatprep.subr.mxu0 0.0
    %1753 = vmatpush2.msra.mxu0 0.0
    %1754 = vmatprep.subr.mxu0 0.0
    %1755 = vmatpush2.msra.mxu0 0.0
    %1756 = vmatprep.subr.mxu0 0.0
    %1757 = vmatpush2.msra.mxu0 0.0
    %1758 = vmatprep.subr.mxu0 0.0
    %1759 = vmatpush2.msra.mxu0 0.0
    %1760 = vmatprep.subr.mxu0 0.0
    %1761 = vmatpush2.msra.mxu0 0.0
    %1762 = vmatprep.subr.mxu0 0.0
    %1763 = vmatpush2.msra.mxu0 0.0
    %1764 = vmatprep.subr.mxu0 0.0
    %1765 = vmatpush2.msra.mxu0 0.0
    %1766 = vmatprep.subr.mxu0 0.0
    %1767 = vmatpush2.msra.mxu0 0.0
    %1768 = vmatprep.subr.mxu0 0.0
    %1769 = vmatpush2.msra.mxu0 0.0
    %1770 = vmatprep.subr.mxu0 0.0
    %1771 = vmatpush2.msra.mxu0 0.0
    %1772 = vmatprep.subr.mxu0 0.0
    %1773 = vmatpush2.msra.mxu0 0.0
    %1774 = vmatprep.subr.mxu0 0.0
    %1775 = vmatpush2.msra.mxu0 0.0
    %1776 = vmatprep.subr.mxu0 0.0
    %1777 = vmatpush2.msra.mxu0 0.0
    %1778 = vmatprep.subr.mxu0 0.0
    %1779 = vmatpush2.msra.mxu0 0.0
    %1780 = vmatprep.subr.mxu0 0.0
    %1781 = vmatpush2.msra.mxu0 0.0
    %1782 = vmatprep.subr.mxu0 0.0
    %1783 = vmatpush2.msra.mxu0 0.0
    %1784 = vmatprep.mubr.f32.mxu0 0.0
    %v1785 = vand.u32 %v1491, 4294901760
    %v1786 = vsub.f32 %v1491, %v1785
    %v1787 = vand.u32 %v1786, 4294901760
    %1788 = vmatmul.mubr.f32.gmra.mxu0 %v1787
    %v1789 = vpop.f32.mrf.mxu0
    %v1790 = vadd.f32 %v1716, %v1789
    %v1791 = vpop.f32.mrf.mxu0
    %1792 = vdwg.mxu0
    %1793 = vmatprep.subr.mxu0 0.0
    %1794 = vmatpush1.msra.mxu0 0.0
    %1795 = vmatprep.subr.mxu0 0.0
    %1796 = vmatpush1.msra.mxu0 0.0
    %1797 = vmatprep.subr.mxu0 0.0
    %1798 = vmatpush1.msra.mxu0 0.0
    %1799 = vmatprep.subr.mxu0 0.0
    %1800 = vmatpush1.msra.mxu0 0.0
    %1801 = vmatprep.subr.mxu0 0.0
    %1802 = vmatpush1.msra.mxu0 0.0
    %1803 = vmatprep.subr.mxu0 0.0
    %1804 = vmatpush1.msra.mxu0 0.0
    %1805 = vmatprep.subr.mxu0 0.0
    %1806 = vmatpush1.msra.mxu0 0.0
    %1807 = vmatprep.subr.mxu0 0.0
    %1808 = vmatpush1.msra.mxu0 0.0
    %1809 = vmatprep.subr.mxu0 0.0
    %1810 = vmatpush1.msra.mxu0 0.0
    %1811 = vmatprep.subr.mxu0 0.0
    %1812 = vmatpush1.msra.mxu0 0.0
    %1813 = vmatprep.subr.mxu0 0.0
    %1814 = vmatpush1.msra.mxu0 0.0
    %1815 = vmatprep.subr.mxu0 0.0
    %1816 = vmatpush1.msra.mxu0 0.0
    %1817 = vmatprep.subr.mxu0 0.0
    %1818 = vmatpush1.msra.mxu0 0.0
    %1819 = vmatprep.subr.mxu0 0.0
    %1820 = vmatpush1.msra.mxu0 0.0
    %1821 = vmatprep.subr.mxu0 0.0
    %1822 = vmatpush1.msra.mxu0 0.0
    %1823 = vmatprep.subr.mxu0 0.0
    %v1824 = vand.u32 %v1483, 4294901760
    %v1825 = vsub.f32 %v1483, %v1824
    %v1826 = vand.u32 %v1825, 4294901760
    %1827 = vmatpush1.msra.mxu0 %v1826
    %1828 = vmatprep.subr.mxu0 0.0
    %1829 = vmatpush2.msra.mxu0 0.0
    %1830 = vmatprep.subr.mxu0 0.0
    %1831 = vmatpush2.msra.mxu0 0.0
    %1832 = vmatprep.subr.mxu0 0.0
    %1833 = vmatpush2.msra.mxu0 0.0
    %1834 = vmatprep.subr.mxu0 0.0
    %1835 = vmatpush2.msra.mxu0 0.0
    %1836 = vmatprep.subr.mxu0 0.0
    %1837 = vmatpush2.msra.mxu0 0.0
    %1838 = vmatprep.subr.mxu0 0.0
    %1839 = vmatpush2.msra.mxu0 0.0
    %1840 = vmatprep.subr.mxu0 0.0
    %1841 = vmatpush2.msra.mxu0 0.0
    %1842 = vmatprep.subr.mxu0 0.0
    %1843 = vmatpush2.msra.mxu0 0.0
    %1844 = vmatprep.subr.mxu0 0.0
    %1845 = vmatpush2.msra.mxu0 0.0
    %1846 = vmatprep.subr.mxu0 0.0
    %1847 = vmatpush2.msra.mxu0 0.0
    %1848 = vmatprep.subr.mxu0 0.0
    %1849 = vmatpush2.msra.mxu0 0.0
    %1850 = vmatprep.subr.mxu0 0.0
    %1851 = vmatpush2.msra.mxu0 0.0
    %1852 = vmatprep.subr.mxu0 0.0
    %1853 = vmatpush2.msra.mxu0 0.0
    %1854 = vmatprep.subr.mxu0 0.0
    %1855 = vmatpush2.msra.mxu0 0.0
    %1856 = vmatprep.subr.mxu0 0.0
    %1857 = vmatpush2.msra.mxu0 0.0
    %1858 = vmatprep.subr.mxu0 0.0
    %1859 = vmatpush2.msra.mxu0 0.0
    %1860 = vmatprep.mubr.f32.mxu0 0.0
    %v1861 = vand.u32 %v1491, 4294901760
    %1862 = vmatmul.mubr.f32.gmra.mxu0 %v1861
    %v1863 = vpop.f32.mrf.mxu0
    %v1864 = vadd.f32 %v1790, %v1863
    %v1865 = vpop.f32.mrf.mxu0
    %1866 = vdwg.mxu0
    %1867 = vmatprep.subr.mxu0 0.0
    %1868 = vmatpush1.msra.mxu0 0.0
    %1869 = vmatprep.subr.mxu0 0.0
    %1870 = vmatpush1.msra.mxu0 0.0
    %1871 = vmatprep.subr.mxu0 0.0
    %1872 = vmatpush1.msra.mxu0 0.0
    %1873 = vmatprep.subr.mxu0 0.0
    %1874 = vmatpush1.msra.mxu0 0.0
    %1875 = vmatprep.subr.mxu0 0.0
    %1876 = vmatpush1.msra.mxu0 0.0
    %1877 = vmatprep.subr.mxu0 0.0
    %1878 = vmatpush1.msra.mxu0 0.0
    %1879 = vmatprep.subr.mxu0 0.0
    %1880 = vmatpush1.msra.mxu0 0.0
    %1881 = vmatprep.subr.mxu0 0.0
    %1882 = vmatpush1.msra.mxu0 0.0
    %1883 = vmatprep.subr.mxu0 0.0
    %1884 = vmatpush1.msra.mxu0 0.0
    %1885 = vmatprep.subr.mxu0 0.0
    %1886 = vmatpush1.msra.mxu0 0.0
    %1887 = vmatprep.subr.mxu0 0.0
    %1888 = vmatpush1.msra.mxu0 0.0
    %1889 = vmatprep.subr.mxu0 0.0
    %1890 = vmatpush1.msra.mxu0 0.0
    %1891 = vmatprep.subr.mxu0 0.0
    %1892 = vmatpush1.msra.mxu0 0.0
    %1893 = vmatprep.subr.mxu0 0.0
    %1894 = vmatpush1.msra.mxu0 0.0
    %1895 = vmatprep.subr.mxu0 0.0
    %1896 = vmatpush1.msra.mxu0 0.0
    %1897 = vmatprep.subr.mxu0 0.0
    %v1898 = vand.u32 %v1483, 4294901760
    %1899 = vmatpush1.msra.mxu0 %v1898
    %1900 = vmatprep.subr.mxu0 0.0
    %1901 = vmatpush2.msra.mxu0 0.0
    %1902 = vmatprep.subr.mxu0 0.0
    %1903 = vmatpush2.msra.mxu0 0.0
    %1904 = vmatprep.subr.mxu0 0.0
    %1905 = vmatpush2.msra.mxu0 0.0
    %1906 = vmatprep.subr.mxu0 0.0
    %1907 = vmatpush2.msra.mxu0 0.0
    %1908 = vmatprep.subr.mxu0 0.0
    %1909 = vmatpush2.msra.mxu0 0.0
    %1910 = vmatprep.subr.mxu0 0.0
    %1911 = vmatpush2.msra.mxu0 0.0
    %1912 = vmatprep.subr.mxu0 0.0
    %1913 = vmatpush2.msra.mxu0 0.0
    %1914 = vmatprep.subr.mxu0 0.0
    %1915 = vmatpush2.msra.mxu0 0.0
    %1916 = vmatprep.subr.mxu0 0.0
    %1917 = vmatpush2.msra.mxu0 0.0
    %1918 = vmatprep.subr.mxu0 0.0
    %1919 = vmatpush2.msra.mxu0 0.0
    %1920 = vmatprep.subr.mxu0 0.0
    %1921 = vmatpush2.msra.mxu0 0.0
    %1922 = vmatprep.subr.mxu0 0.0
    %1923 = vmatpush2.msra.mxu0 0.0
    %1924 = vmatprep.subr.mxu0 0.0
    %1925 = vmatpush2.msra.mxu0 0.0
    %1926 = vmatprep.subr.mxu0 0.0
    %1927 = vmatpush2.msra.mxu0 0.0
    %1928 = vmatprep.subr.mxu0 0.0
    %1929 = vmatpush2.msra.mxu0 0.0
    %1930 = vmatprep.subr.mxu0 0.0
    %1931 = vmatpush2.msra.mxu0 0.0
    %1932 = vmatprep.mubr.f32.mxu0 0.0
    %v1933 = vand.u32 %v1491, 4294901760
    %1934 = vmatmul.mubr.f32.gmra.mxu0 %v1933
    %v1935 = vpop.f32.mrf.mxu0
    %v1936 = vadd.f32 %v1864, %v1935
    %v1937 = vpop.f32.mrf.mxu0
    %1938 = vdwg.mxu0
    %vm1939 = vcmask 15360
    %1940 = vst.msk [vmem:[%s2] sm:$0xff] %vm1939, %v1936
    // Predicated region
    $region18: #{tpu_custom_call.1} parent=1 // pred_check
      _
    $region19: #{tpu_custom_call.1} parent=1 // pred_check_branch
      %1942 = sbr.rel (0) target = $region21
    $region20: #{tpu_custom_call.1} parent=1 // pred_region
      _
    $region21: #{tpu_custom_call.1} parent=1 // pred_fallthru
      _
    // Predicated region
    $region22: #{tpu_custom_call.1} parent=1 // pred_check
      _
    $region23: #{tpu_custom_call.1} parent=1 // pred_check_branch
      %1944 = sbr.rel (0) target = $region25
    $region24: #{tpu_custom_call.1} parent=1 // pred_region
      _
    $region25: #{tpu_custom_call.1} parent=1 // pred_fallthru
      _
    %1945 = vsyncpa [#allocation3], 1
    %1946 = vsyncpa [#allocation5], 1

</llo_original>
